<compile_context>
chip_gen: v5e
topology: v5e:2x2
jax: 0.10.0
libtpu: 0.0.40
codegen_flags: <defaults>
</compile_context>

<pallas_src>
import math
from functools import partial

import jax
import jax.numpy as jnp
from jax import lax
from jax.experimental import pallas as pl
from jax.experimental.pallas import tpu as pltpu


LANE = 128  # lane-dense width of the classifier/loss output slab


# ----------------------- synthetic DistilBERT config ----------------------

class Config:
    vocab_size = 100
    max_position = 16
    dim = 32          # hidden_size
    n_heads = 2
    n_layers = 2
    hidden_dim = 64   # FFN intermediate
    num_labels = 3


def init_params(key, cfg):
    std = 0.02
    D, Hd, L, H = cfg.dim, cfg.hidden_dim, cfg.n_layers, cfg.n_heads
    Dh = D // H
    ks = jax.random.split(key, 9)

    def rnd(k, shape):
        return jax.random.normal(k, shape, jnp.float32) * std

    def bf(a):
        return a.astype(jnp.bfloat16)

    wk = rnd(ks[3], (L, H, D, Dh))
    clf_w = jnp.zeros((D, LANE), jnp.float32).at[:, :cfg.num_labels].set(
        rnd(ks[8], (D, cfg.num_labels)))

    return {
        # embeddings stay f32 (gather happens in the wrapper)
        "word_emb": rnd(ks[0], (cfg.vocab_size, D)),
        "pos_emb": rnd(ks[1], (cfg.max_position, D)),
        "emb_ln_g": jnp.ones((1, D), jnp.float32),
        "emb_ln_b": jnp.zeros((1, D), jnp.float32),
        # per-head projections, head on leading axis; matmul weights in bf16
        "wq": bf(rnd(ks[2], (L, H, D, Dh))),
        "bq": jnp.zeros((L, H, 1, Dh), jnp.float32),
        "wk_t": bf(jnp.transpose(wk, (0, 1, 3, 2))),   # (L, H, Dh, D)
        "bk_t": jnp.zeros((L, H, Dh, 1), jnp.float32),
        "wv": bf(rnd(ks[4], (L, H, D, Dh))),
        "bv": jnp.zeros((L, H, 1, Dh), jnp.float32),
        "wo": bf(rnd(ks[5], (L, D, D))),
        "bo": jnp.zeros((L, 1, D), jnp.float32),
        "ln1_g": jnp.ones((L, 1, D), jnp.float32),
        "ln1_b": jnp.zeros((L, 1, D), jnp.float32),
        "w_ffn1": bf(rnd(ks[6], (L, D, Hd))),
        "b_ffn1": jnp.zeros((L, 1, Hd), jnp.float32),
        "w_ffn2": bf(rnd(ks[7], (L, Hd, D))),
        "b_ffn2": jnp.zeros((L, 1, D), jnp.float32),
        "ln2_g": jnp.ones((L, 1, D), jnp.float32),
        "ln2_b": jnp.zeros((L, 1, D), jnp.float32),
        # classifier zero-padded to a lane-dense 128-wide slab
        "clf_w": bf(clf_w),
        "clf_b": jnp.zeros((1, LANE), jnp.float32),
    }


_PARAM_ORDER = ("emb_ln_g", "emb_ln_b",
                "wq", "bq", "wk_t", "bk_t", "wv", "bv",
                "wo", "bo", "ln1_g", "ln1_b",
                "w_ffn1", "b_ffn1", "w_ffn2", "b_ffn2",
                "ln2_g", "ln2_b", "clf_w", "clf_b")


# ------------------------------ fused kernel -------------------------------

def _fused_forward_kernel(
        # inputs (per-example blocks + whole-array params)
        x_ref, mask_ref, labels_ref,
        emb_g_ref, emb_b_ref,
        wq_ref, bq_ref, wkt_ref, bkt_ref, wv_ref, bv_ref,
        wo_ref, bo_ref, ln1g_ref, ln1b_ref,
        w1_ref, b1_ref, w2_ref, b2_ref, ln2g_ref, ln2b_ref,
        clfw_ref, clfb_ref,
        # output: (1, LANE) slab = [logits | ... | per-example NLL in lane 127]
        logits_ref,
        *, S, H, Dh, n_layers, num_labels, scale):
    f32 = jnp.float32
    bf16 = jnp.bfloat16

    def layernorm(h, g, b, eps=1e-12):
        mu = jnp.mean(h, axis=-1, keepdims=True)
        d = h - mu
        var = jnp.mean(d * d, axis=-1, keepdims=True)
        return d * lax.rsqrt(var + eps) * g + b

    # embedding LayerNorm (this program's (S, D) slice)
    x = layernorm(x_ref[...], emb_g_ref[...], emb_b_ref[...])          # (S, D) f32

    # additive key mask, hoisted once (layer/head independent)
    neg = (mask_ref[...] - 1.0) * f32(1e9)                             # (1, S)
    neg_b = jnp.broadcast_to(neg, (S, S))                              # (S, S)

    for l in range(n_layers):        # toy L=2: static unroll is fine
        xb = x.astype(bf16)                                            # (S, D)
        xbt = x.T.astype(bf16)       # (D, S): one transpose/layer -> K pre-transposed

        heads = []
        for h in range(H):
            q = jnp.dot(xb, wq_ref[l, h],
                        preferred_element_type=f32) + bq_ref[l, h]     # (S, Dh)
            kt = jnp.dot(wkt_ref[l, h], xbt,
                         preferred_element_type=f32) + bkt_ref[l, h]   # (Dh, S)
            v = jnp.dot(xb, wv_ref[l, h],
                        preferred_element_type=f32) + bv_ref[l, h]     # (S, Dh)
            # clean contraction (q last dim vs kT first dim) -> no per-head transpose
            s = jnp.dot(q.astype(bf16), kt.astype(bf16),
                        preferred_element_type=f32) * scale + neg_b    # (S, S)
            m = jnp.max(s, axis=-1, keepdims=True)
            p = jnp.exp(s - m)
            p = p * pl.reciprocal(jnp.sum(p, axis=-1, keepdims=True), approx=True)
            heads.append(jnp.dot(p.astype(bf16), v.astype(bf16),
                                 preferred_element_type=f32))          # (S, Dh)

        # register-resident context: lane-axis concat, no VMEM round-trip
        ctx = jnp.concatenate(heads, axis=-1)                          # (S, D)
        attn_out = jnp.dot(ctx.astype(bf16), wo_ref[l],
                           preferred_element_type=f32) + bo_ref[l]
        x = layernorm(attn_out + x, ln1g_ref[l], ln1b_ref[l])

        # ---- FFN ----
        h1 = jnp.dot(x.astype(bf16), w1_ref[l],
                     preferred_element_type=f32) + b1_ref[l]
        # TODO(synk): HF DistilBERT uses erf-GELU; tanh approx (~1e-3) keeps EUP-only ops.
        c = math.sqrt(2.0 / math.pi)
        h1 = 0.5 * h1 * (1.0 + jnp.tanh(c * (h1 + 0.044715 * h1 * h1 * h1)))
        ffn = jnp.dot(h1.astype(bf16), w2_ref[l],
                      preferred_element_type=f32) + b2_ref[l]
        x = layernorm(ffn + x, ln2g_ref[l], ln2b_ref[l])

    # ---- CLS pooling + classifier + CE, all lane-dense ----
    # nn.Dropout(0.1) is the identity at inference time.
    cls = x[0:1, :].astype(bf16)                                       # (1, D)
    row = jnp.dot(cls, clfw_ref[...],
                  preferred_element_type=f32) + clfb_ref[...]          # (1, LANE)
    col = lax.broadcasted_iota(jnp.int32, (1, LANE), 1)
    ml = jnp.where(col < num_labels, row, f32(-1e30))
    m = jnp.max(ml, axis=-1, keepdims=True)
    lse = jnp.log(jnp.sum(jnp.exp(ml - m), axis=-1, keepdims=True)) + m
    lbl = labels_ref[pl.program_id(0)]                                 # SMEM scalar
    tgt = jnp.sum(jnp.where(col == lbl, row, 0.0), axis=-1, keepdims=True)
    nll = lse - tgt                                                    # (1, 1)
    # logits in lanes [0, num_labels), per-example NLL folded into lane 127
    logits_ref[...] = jnp.where(col == LANE - 1, nll, row)


def _full_spec(shape):
    zeros = (0,) * len(shape)
    return pl.BlockSpec(shape, lambda i, _z=zeros: _z)


def _fused_forward(params, cfg, x_emb, mask3, labels_arr, B, S):
    D, H, L = cfg.dim, cfg.n_heads, cfg.n_layers
    Dh = D // H
    kernel = partial(_fused_forward_kernel,
                     S=S, H=H, Dh=Dh, n_layers=L,
                     num_labels=cfg.num_labels, scale=1.0 / math.sqrt(Dh))

    param_args = [params[k] for k in _PARAM_ORDER]
    in_specs = ([pl.BlockSpec((None, S, D), lambda i: (i, 0, 0)),      # hidden block
                 pl.BlockSpec((None, 1, S), lambda i: (i, 0, 0)),      # mask row
                 pl.BlockSpec(memory_space=pltpu.MemorySpace.SMEM)]    # labels
                + [_full_spec(p.shape) for p in param_args])
    out_shape = jax.ShapeDtypeStruct((B, 1, LANE), jnp.float32)
    out_specs = pl.BlockSpec((None, 1, LANE), lambda i: (i, 0, 0))

    return pl.pallas_call(
        kernel,
        grid=(B,),                               # batch-parallel: feeds both v7x cores
        out_shape=out_shape,
        in_specs=in_specs,
        out_specs=out_specs,
        compiler_params=pltpu.CompilerParams(
            dimension_semantics=("parallel",)),
    )(x_emb, mask3, labels_arr, *param_args)


# ------------------------------ forward pass ------------------------------

def distilbert_classifier_forward(params, cfg, input_ids, attention_mask,
                                  labels=None):
    B, S = input_ids.shape
    # Embedding gather + positional add left to XLA at toy size (see TODO above).
    hidden = jnp.take(params["word_emb"], input_ids, axis=0)           # (B, S, D)
    hidden = (hidden + params["pos_emb"][:S][None, :, :]).astype(jnp.float32)
    mask3 = attention_mask.astype(jnp.float32).reshape(B, 1, S)
    labels_arr = (labels.astype(jnp.int32) if labels is not None
                  else jnp.zeros((B,), jnp.int32))

    out = _fused_forward(params, cfg, hidden, mask3, labels_arr, B, S)
    out = out.reshape(B, LANE)
    logits = out[:, :cfg.num_labels]
    loss = jnp.mean(out[:, LANE - 1]) if labels is not None else None
    return {"loss": loss, "logits": logits}


# ---------------------------------- main -----------------------------------

if __name__ == "__main__":
    cfg = Config()
    key = jax.random.PRNGKey(0)
    pkey, ikey, lkey = jax.random.split(key, 3)
    params = init_params(pkey, cfg)

    B, S = 2, 8
    input_ids = jax.random.randint(ikey, (B, S), 0, cfg.vocab_size,
                                   dtype=jnp.int32)
    attention_mask = jnp.ones((B, S), dtype=jnp.int32).at[1, 6:].set(0)
    labels = jax.random.randint(lkey, (B,), 0, cfg.num_labels, dtype=jnp.int32)

    fwd = jax.jit(lambda p, ids, m, lab:
                  distilbert_classifier_forward(p, cfg, ids, m, lab))
    out = fwd(params, input_ids, attention_mask, labels)
    jax.block_until_ready(out["logits"])
    jax.block_until_ready(out["loss"])

    assert out["logits"].shape == (B, cfg.num_labels)
    assert bool(jnp.all(jnp.isfinite(out["logits"])))
    assert bool(jnp.isfinite(out["loss"]))
    print("KERNEL_OK")
</pallas_src>

<mosaic_0001>
module attributes {stable_mosaic.version = 11 : i64} {
  func.func @_fused_forward_kernel(%arg0: i32, %arg1: memref<1x8x32xf32, #tpu.memory_space<vmem>>, %arg2: memref<1x1x8xf32, #tpu.memory_space<vmem>>, %arg3: memref<2xi32, #tpu.memory_space<smem>>, %arg4: memref<1x32xf32, #tpu.memory_space<vmem>>, %arg5: memref<1x32xf32, #tpu.memory_space<vmem>>, %arg6: memref<2x2x32x16xbf16, #tpu.memory_space<vmem>>, %arg7: memref<2x2x1x16xf32, #tpu.memory_space<vmem>>, %arg8: memref<2x2x16x32xbf16, #tpu.memory_space<vmem>>, %arg9: memref<2x2x16x1xf32, #tpu.memory_space<vmem>>, %arg10: memref<2x2x32x16xbf16, #tpu.memory_space<vmem>>, %arg11: memref<2x2x1x16xf32, #tpu.memory_space<vmem>>, %arg12: memref<2x32x32xbf16, #tpu.memory_space<vmem>>, %arg13: memref<2x1x32xf32, #tpu.memory_space<vmem>>, %arg14: memref<2x1x32xf32, #tpu.memory_space<vmem>>, %arg15: memref<2x1x32xf32, #tpu.memory_space<vmem>>, %arg16: memref<2x32x64xbf16, #tpu.memory_space<vmem>>, %arg17: memref<2x1x64xf32, #tpu.memory_space<vmem>>, %arg18: memref<2x64x32xbf16, #tpu.memory_space<vmem>>, %arg19: memref<2x1x32xf32, #tpu.memory_space<vmem>>, %arg20: memref<2x1x32xf32, #tpu.memory_space<vmem>>, %arg21: memref<2x1x32xf32, #tpu.memory_space<vmem>>, %arg22: memref<32x128xbf16, #tpu.memory_space<vmem>>, %arg23: memref<1x128xf32, #tpu.memory_space<vmem>>, %arg24: memref<1x1x128xf32, #tpu.memory_space<vmem>>) attributes {dimension_semantics = [#tpu.dimension_semantics<parallel>], iteration_bounds = array<i64: 2>, scalar_prefetch = 0 : i64, scratch_operands = 0 : i64, tpu.core_type = #tpu.core_type<tc>, window_params = [{transform_indices = @transform_0, window_bounds = array<i64: 1, 8, 32>}, {transform_indices = @transform_1, window_bounds = array<i64: 1, 1, 8>}, {transform_indices = @transform_2, window_bounds = array<i64: 2>}, {pipeline_mode = #tpu.pipeline_mode<synchronous>, transform_indices = @transform_3, window_bounds = array<i64: 1, 32>}, {pipeline_mode = #tpu.pipeline_mode<synchronous>, transform_indices = @transform_4, window_bounds = array<i64: 1, 32>}, {pipeline_mode = #tpu.pipeline_mode<synchronous>, transform_indices = @transform_5, window_bounds = array<i64: 2, 2, 32, 16>}, {pipeline_mode = #tpu.pipeline_mode<synchronous>, transform_indices = @transform_6, window_bounds = array<i64: 2, 2, 1, 16>}, {pipeline_mode = #tpu.pipeline_mode<synchronous>, transform_indices = @transform_7, window_bounds = array<i64: 2, 2, 16, 32>}, {pipeline_mode = #tpu.pipeline_mode<synchronous>, transform_indices = @transform_8, window_bounds = array<i64: 2, 2, 16, 1>}, {pipeline_mode = #tpu.pipeline_mode<synchronous>, transform_indices = @transform_9, window_bounds = array<i64: 2, 2, 32, 16>}, {pipeline_mode = #tpu.pipeline_mode<synchronous>, transform_indices = @transform_10, window_bounds = array<i64: 2, 2, 1, 16>}, {pipeline_mode = #tpu.pipeline_mode<synchronous>, transform_indices = @transform_11, window_bounds = array<i64: 2, 32, 32>}, {pipeline_mode = #tpu.pipeline_mode<synchronous>, transform_indices = @transform_12, window_bounds = array<i64: 2, 1, 32>}, {pipeline_mode = #tpu.pipeline_mode<synchronous>, transform_indices = @transform_13, window_bounds = array<i64: 2, 1, 32>}, {pipeline_mode = #tpu.pipeline_mode<synchronous>, transform_indices = @transform_14, window_bounds = array<i64: 2, 1, 32>}, {pipeline_mode = #tpu.pipeline_mode<synchronous>, transform_indices = @transform_15, window_bounds = array<i64: 2, 32, 64>}, {pipeline_mode = #tpu.pipeline_mode<synchronous>, transform_indices = @transform_16, window_bounds = array<i64: 2, 1, 64>}, {pipeline_mode = #tpu.pipeline_mode<synchronous>, transform_indices = @transform_17, window_bounds = array<i64: 2, 64, 32>}, {pipeline_mode = #tpu.pipeline_mode<synchronous>, transform_indices = @transform_18, window_bounds = array<i64: 2, 1, 32>}, {pipeline_mode = #tpu.pipeline_mode<synchronous>, transform_indices = @transform_19, window_bounds = array<i64: 2, 1, 32>}, {pipeline_mode = #tpu.pipeline_mode<synchronous>, transform_indices = @transform_20, window_bounds = array<i64: 2, 1, 32>}, {pipeline_mode = #tpu.pipeline_mode<synchronous>, transform_indices = @transform_21, window_bounds = array<i64: 32, 128>}, {pipeline_mode = #tpu.pipeline_mode<synchronous>, transform_indices = @transform_22, window_bounds = array<i64: 1, 128>}, {transform_indices = @transform_23, window_bounds = array<i64: 1, 1, 128>}]} {
    %c0 = arith.constant 0 : index
    %c0_0 = arith.constant 0 : index
    %c0_1 = arith.constant 0 : index
    %0 = vector.load %arg1[%c0, %c0_0, %c0_1] : memref<1x8x32xf32, #tpu.memory_space<vmem>>, vector<1x8x32xf32>
    %1 = vector.shape_cast %0 : vector<1x8x32xf32> to vector<8x32xf32>
    %c0_2 = arith.constant 0 : index
    %c0_3 = arith.constant 0 : index
    %2 = vector.load %arg4[%c0_2, %c0_3] : memref<1x32xf32, #tpu.memory_space<vmem>>, vector<1x32xf32>
    %c0_4 = arith.constant 0 : index
    %c0_5 = arith.constant 0 : index
    %3 = vector.load %arg5[%c0_4, %c0_5] : memref<1x32xf32, #tpu.memory_space<vmem>>, vector<1x32xf32>
    %cst = arith.constant dense<0.000000e+00> : vector<8xf32>
    %4 = vector.multi_reduction <add>, %1, %cst [1] : vector<8x32xf32> to vector<8xf32>
    %5 = vector.shape_cast %4 : vector<8xf32> to vector<8x1xf32>
    %cst_6 = arith.constant 3.200000e+01 : f32
    %6 = vector.broadcast %cst_6 : f32 to vector<8x1xf32>
    %7 = arith.divf %5, %6 : vector<8x1xf32>
    %8 = vector.broadcast %7 : vector<8x1xf32> to vector<8x32xf32>
    %9 = arith.subf %1, %8 : vector<8x32xf32>
    %10 = arith.mulf %9, %9 : vector<8x32xf32>
    %cst_7 = arith.constant dense<0.000000e+00> : vector<8xf32>
    %11 = vector.multi_reduction <add>, %10, %cst_7 [1] : vector<8x32xf32> to vector<8xf32>
    %12 = vector.shape_cast %11 : vector<8xf32> to vector<8x1xf32>
    %cst_8 = arith.constant 3.200000e+01 : f32
    %13 = vector.broadcast %cst_8 : f32 to vector<8x1xf32>
    %14 = arith.divf %12, %13 : vector<8x1xf32>
    %cst_9 = arith.constant 9.99999996E-13 : f32
    %15 = vector.broadcast %cst_9 : f32 to vector<8x1xf32>
    %16 = arith.addf %14, %15 : vector<8x1xf32>
    %17 = math.rsqrt %16 : vector<8x1xf32>
    %18 = vector.broadcast %17 : vector<8x1xf32> to vector<8x32xf32>
    %19 = arith.mulf %9, %18 : vector<8x32xf32>
    %20 = vector.broadcast %2 : vector<1x32xf32> to vector<8x32xf32>
    %21 = arith.mulf %19, %20 : vector<8x32xf32>
    %22 = vector.broadcast %3 : vector<1x32xf32> to vector<8x32xf32>
    %23 = arith.addf %21, %22 : vector<8x32xf32>
    %c0_10 = arith.constant 0 : index
    %c0_11 = arith.constant 0 : index
    %c0_12 = arith.constant 0 : index
    %24 = vector.load %arg2[%c0_10, %c0_11, %c0_12] : memref<1x1x8xf32, #tpu.memory_space<vmem>>, vector<1x1x8xf32>
    %25 = vector.shape_cast %24 : vector<1x1x8xf32> to vector<1x8xf32>
    %cst_13 = arith.constant 1.000000e+00 : f32
    %26 = vector.broadcast %cst_13 : f32 to vector<1x8xf32>
    %27 = arith.subf %25, %26 : vector<1x8xf32>
    %cst_14 = arith.constant 1.000000e+09 : f32
    %28 = vector.broadcast %cst_14 : f32 to vector<1x8xf32>
    %29 = arith.mulf %27, %28 : vector<1x8xf32>
    %30 = vector.shape_cast %29 : vector<1x8xf32> to vector<1x8xf32>
    %31 = vector.broadcast %30 : vector<1x8xf32> to vector<8x8xf32>
    %32 = arith.truncf %23 : vector<8x32xf32> to vector<8x32xbf16>
    %33 = tpu.transpose %23, [1, 0] : vector<8x32xf32> -> vector<32x8xf32>
    %34 = arith.truncf %33 : vector<32x8xf32> to vector<32x8xbf16>
    %c0_15 = arith.constant 0 : index
    %c0_16 = arith.constant 0 : index
    %c0_17 = arith.constant 0 : index
    %c0_18 = arith.constant 0 : index
    %35 = vector.load %arg6[%c0_15, %c0_16, %c0_17, %c0_18] : memref<2x2x32x16xbf16, #tpu.memory_space<vmem>>, vector<1x1x32x16xbf16>
    %36 = vector.shape_cast %35 : vector<1x1x32x16xbf16> to vector<32x16xbf16>
    %cst_19 = arith.constant dense<0.000000e+00> : vector<8x16xf32>
    %37 = tpu.matmul %32, %36, %cst_19 {dimension_numbers = #tpu.dot_dimension_numbers<[1], [0], [0], [1], [0, 0, 1, 1], [], []>} : vector<8x32xbf16>, vector<32x16xbf16>, vector<8x16xf32> -> vector<8x16xf32>
    %c0_20 = arith.constant 0 : index
    %c0_21 = arith.constant 0 : index
    %c0_22 = arith.constant 0 : index
    %c0_23 = arith.constant 0 : index
    %38 = vector.load %arg7[%c0_20, %c0_21, %c0_22, %c0_23] : memref<2x2x1x16xf32, #tpu.memory_space<vmem>>, vector<1x1x1x16xf32>
    %39 = vector.shape_cast %38 : vector<1x1x1x16xf32> to vector<1x16xf32>
    %40 = vector.broadcast %39 : vector<1x16xf32> to vector<8x16xf32>
    %41 = arith.addf %37, %40 : vector<8x16xf32>
    %c0_24 = arith.constant 0 : index
    %c0_25 = arith.constant 0 : index
    %c0_26 = arith.constant 0 : index
    %c0_27 = arith.constant 0 : index
    %42 = vector.load %arg8[%c0_24, %c0_25, %c0_26, %c0_27] : memref<2x2x16x32xbf16, #tpu.memory_space<vmem>>, vector<1x1x16x32xbf16>
    %43 = vector.shape_cast %42 : vector<1x1x16x32xbf16> to vector<16x32xbf16>
    %cst_28 = arith.constant dense<0.000000e+00> : vector<16x8xf32>
    %44 = tpu.matmul %43, %34, %cst_28 {dimension_numbers = #tpu.dot_dimension_numbers<[1], [0], [0], [1], [0, 0, 1, 1], [], []>} : vector<16x32xbf16>, vector<32x8xbf16>, vector<16x8xf32> -> vector<16x8xf32>
    %c0_29 = arith.constant 0 : index
    %c0_30 = arith.constant 0 : index
    %c0_31 = arith.constant 0 : index
    %c0_32 = arith.constant 0 : index
    %45 = vector.load %arg9[%c0_29, %c0_30, %c0_31, %c0_32] : memref<2x2x16x1xf32, #tpu.memory_space<vmem>>, vector<1x1x16x1xf32>
    %46 = vector.shape_cast %45 : vector<1x1x16x1xf32> to vector<16x1xf32>
    %47 = vector.broadcast %46 : vector<16x1xf32> to vector<16x8xf32>
    %48 = arith.addf %44, %47 : vector<16x8xf32>
    %c0_33 = arith.constant 0 : index
    %c0_34 = arith.constant 0 : index
    %c0_35 = arith.constant 0 : index
    %c0_36 = arith.constant 0 : index
    %49 = vector.load %arg10[%c0_33, %c0_34, %c0_35, %c0_36] : memref<2x2x32x16xbf16, #tpu.memory_space<vmem>>, vector<1x1x32x16xbf16>
    %50 = vector.shape_cast %49 : vector<1x1x32x16xbf16> to vector<32x16xbf16>
    %cst_37 = arith.constant dense<0.000000e+00> : vector<8x16xf32>
    %51 = tpu.matmul %32, %50, %cst_37 {dimension_numbers = #tpu.dot_dimension_numbers<[1], [0], [0], [1], [0, 0, 1, 1], [], []>} : vector<8x32xbf16>, vector<32x16xbf16>, vector<8x16xf32> -> vector<8x16xf32>
    %c0_38 = arith.constant 0 : index
    %c0_39 = arith.constant 0 : index
    %c0_40 = arith.constant 0 : index
    %c0_41 = arith.constant 0 : index
    %52 = vector.load %arg11[%c0_38, %c0_39, %c0_40, %c0_41] : memref<2x2x1x16xf32, #tpu.memory_space<vmem>>, vector<1x1x1x16xf32>
    %53 = vector.shape_cast %52 : vector<1x1x1x16xf32> to vector<1x16xf32>
    %54 = vector.broadcast %53 : vector<1x16xf32> to vector<8x16xf32>
    %55 = arith.addf %51, %54 : vector<8x16xf32>
    %56 = arith.truncf %41 : vector<8x16xf32> to vector<8x16xbf16>
    %57 = arith.truncf %48 : vector<16x8xf32> to vector<16x8xbf16>
    %cst_42 = arith.constant dense<0.000000e+00> : vector<8x8xf32>
    %58 = tpu.matmul %56, %57, %cst_42 {dimension_numbers = #tpu.dot_dimension_numbers<[1], [0], [0], [1], [0, 0, 1, 1], [], []>} : vector<8x16xbf16>, vector<16x8xbf16>, vector<8x8xf32> -> vector<8x8xf32>
    %cst_43 = arith.constant 2.500000e-01 : f32
    %59 = vector.broadcast %cst_43 : f32 to vector<8x8xf32>
    %60 = arith.mulf %58, %59 : vector<8x8xf32>
    %61 = arith.addf %60, %31 : vector<8x8xf32>
    %cst_44 = arith.constant dense<0xFF800000> : vector<8xf32>
    %62 = vector.multi_reduction <maximumf>, %61, %cst_44 [1] : vector<8x8xf32> to vector<8xf32>
    %63 = vector.shape_cast %62 : vector<8xf32> to vector<8x1xf32>
    %64 = vector.broadcast %63 : vector<8x1xf32> to vector<8x8xf32>
    %65 = arith.subf %61, %64 : vector<8x8xf32>
    %66 = math.exp %65 : vector<8x8xf32>
    %cst_45 = arith.constant dense<0.000000e+00> : vector<8xf32>
    %67 = vector.multi_reduction <add>, %66, %cst_45 [1] : vector<8x8xf32> to vector<8xf32>
    %68 = vector.shape_cast %67 : vector<8xf32> to vector<8x1xf32>
    %69 = tpu.reciprocal %68 {approx = true} : vector<8x1xf32> -> vector<8x1xf32>
    %70 = vector.broadcast %69 : vector<8x1xf32> to vector<8x8xf32>
    %71 = arith.mulf %66, %70 : vector<8x8xf32>
    %72 = arith.truncf %71 : vector<8x8xf32> to vector<8x8xbf16>
    %73 = arith.truncf %55 : vector<8x16xf32> to vector<8x16xbf16>
    %cst_46 = arith.constant dense<0.000000e+00> : vector<8x16xf32>
    %74 = tpu.matmul %72, %73, %cst_46 {dimension_numbers = #tpu.dot_dimension_numbers<[1], [0], [0], [1], [0, 0, 1, 1], [], []>} : vector<8x8xbf16>, vector<8x16xbf16>, vector<8x16xf32> -> vector<8x16xf32>
    %c0_47 = arith.constant 0 : index
    %c1 = arith.constant 1 : index
    %c0_48 = arith.constant 0 : index
    %c0_49 = arith.constant 0 : index
    %75 = vector.load %arg6[%c0_47, %c1, %c0_48, %c0_49] : memref<2x2x32x16xbf16, #tpu.memory_space<vmem>>, vector<1x1x32x16xbf16>
    %76 = vector.shape_cast %75 : vector<1x1x32x16xbf16> to vector<32x16xbf16>
    %cst_50 = arith.constant dense<0.000000e+00> : vector<8x16xf32>
    %77 = tpu.matmul %32, %76, %cst_50 {dimension_numbers = #tpu.dot_dimension_numbers<[1], [0], [0], [1], [0, 0, 1, 1], [], []>} : vector<8x32xbf16>, vector<32x16xbf16>, vector<8x16xf32> -> vector<8x16xf32>
    %c0_51 = arith.constant 0 : index
    %c1_52 = arith.constant 1 : index
    %c0_53 = arith.constant 0 : index
    %c0_54 = arith.constant 0 : index
    %78 = vector.load %arg7[%c0_51, %c1_52, %c0_53, %c0_54] : memref<2x2x1x16xf32, #tpu.memory_space<vmem>>, vector<1x1x1x16xf32>
    %79 = vector.shape_cast %78 : vector<1x1x1x16xf32> to vector<1x16xf32>
    %80 = vector.broadcast %79 : vector<1x16xf32> to vector<8x16xf32>
    %81 = arith.addf %77, %80 : vector<8x16xf32>
    %c0_55 = arith.constant 0 : index
    %c1_56 = arith.constant 1 : index
    %c0_57 = arith.constant 0 : index
    %c0_58 = arith.constant 0 : index
    %82 = vector.load %arg8[%c0_55, %c1_56, %c0_57, %c0_58] : memref<2x2x16x32xbf16, #tpu.memory_space<vmem>>, vector<1x1x16x32xbf16>
    %83 = vector.shape_cast %82 : vector<1x1x16x32xbf16> to vector<16x32xbf16>
    %cst_59 = arith.constant dense<0.000000e+00> : vector<16x8xf32>
    %84 = tpu.matmul %83, %34, %cst_59 {dimension_numbers = #tpu.dot_dimension_numbers<[1], [0], [0], [1], [0, 0, 1, 1], [], []>} : vector<16x32xbf16>, vector<32x8xbf16>, vector<16x8xf32> -> vector<16x8xf32>
    %c0_60 = arith.constant 0 : index
    %c1_61 = arith.constant 1 : index
    %c0_62 = arith.constant 0 : index
    %c0_63 = arith.constant 0 : index
    %85 = vector.load %arg9[%c0_60, %c1_61, %c0_62, %c0_63] : memref<2x2x16x1xf32, #tpu.memory_space<vmem>>, vector<1x1x16x1xf32>
    %86 = vector.shape_cast %85 : vector<1x1x16x1xf32> to vector<16x1xf32>
    %87 = vector.broadcast %86 : vector<16x1xf32> to vector<16x8xf32>
    %88 = arith.addf %84, %87 : vector<16x8xf32>
    %c0_64 = arith.constant 0 : index
    %c1_65 = arith.constant 1 : index
    %c0_66 = arith.constant 0 : index
    %c0_67 = arith.constant 0 : index
    %89 = vector.load %arg10[%c0_64, %c1_65, %c0_66, %c0_67] : memref<2x2x32x16xbf16, #tpu.memory_space<vmem>>, vector<1x1x32x16xbf16>
    %90 = vector.shape_cast %89 : vector<1x1x32x16xbf16> to vector<32x16xbf16>
    %cst_68 = arith.constant dense<0.000000e+00> : vector<8x16xf32>
    %91 = tpu.matmul %32, %90, %cst_68 {dimension_numbers = #tpu.dot_dimension_numbers<[1], [0], [0], [1], [0, 0, 1, 1], [], []>} : vector<8x32xbf16>, vector<32x16xbf16>, vector<8x16xf32> -> vector<8x16xf32>
    %c0_69 = arith.constant 0 : index
    %c1_70 = arith.constant 1 : index
    %c0_71 = arith.constant 0 : index
    %c0_72 = arith.constant 0 : index
    %92 = vector.load %arg11[%c0_69, %c1_70, %c0_71, %c0_72] : memref<2x2x1x16xf32, #tpu.memory_space<vmem>>, vector<1x1x1x16xf32>
    %93 = vector.shape_cast %92 : vector<1x1x1x16xf32> to vector<1x16xf32>
    %94 = vector.broadcast %93 : vector<1x16xf32> to vector<8x16xf32>
    %95 = arith.addf %91, %94 : vector<8x16xf32>
    %96 = arith.truncf %81 : vector<8x16xf32> to vector<8x16xbf16>
    %97 = arith.truncf %88 : vector<16x8xf32> to vector<16x8xbf16>
    %cst_73 = arith.constant dense<0.000000e+00> : vector<8x8xf32>
    %98 = tpu.matmul %96, %97, %cst_73 {dimension_numbers = #tpu.dot_dimension_numbers<[1], [0], [0], [1], [0, 0, 1, 1], [], []>} : vector<8x16xbf16>, vector<16x8xbf16>, vector<8x8xf32> -> vector<8x8xf32>
    %cst_74 = arith.constant 2.500000e-01 : f32
    %99 = vector.broadcast %cst_74 : f32 to vector<8x8xf32>
    %100 = arith.mulf %98, %99 : vector<8x8xf32>
    %101 = arith.addf %100, %31 : vector<8x8xf32>
    %cst_75 = arith.constant dense<0xFF800000> : vector<8xf32>
    %102 = vector.multi_reduction <maximumf>, %101, %cst_75 [1] : vector<8x8xf32> to vector<8xf32>
    %103 = vector.shape_cast %102 : vector<8xf32> to vector<8x1xf32>
    %104 = vector.broadcast %103 : vector<8x1xf32> to vector<8x8xf32>
    %105 = arith.subf %101, %104 : vector<8x8xf32>
    %106 = math.exp %105 : vector<8x8xf32>
    %cst_76 = arith.constant dense<0.000000e+00> : vector<8xf32>
    %107 = vector.multi_reduction <add>, %106, %cst_76 [1] : vector<8x8xf32> to vector<8xf32>
    %108 = vector.shape_cast %107 : vector<8xf32> to vector<8x1xf32>
    %109 = tpu.reciprocal %108 {approx = true} : vector<8x1xf32> -> vector<8x1xf32>
    %110 = vector.broadcast %109 : vector<8x1xf32> to vector<8x8xf32>
    %111 = arith.mulf %106, %110 : vector<8x8xf32>
    %112 = arith.truncf %111 : vector<8x8xf32> to vector<8x8xbf16>
    %113 = arith.truncf %95 : vector<8x16xf32> to vector<8x16xbf16>
    %cst_77 = arith.constant dense<0.000000e+00> : vector<8x16xf32>
    %114 = tpu.matmul %112, %113, %cst_77 {dimension_numbers = #tpu.dot_dimension_numbers<[1], [0], [0], [1], [0, 0, 1, 1], [], []>} : vector<8x8xbf16>, vector<8x16xbf16>, vector<8x16xf32> -> vector<8x16xf32>
    %115 = tpu.concatenate %74, %114 in 1 : vector<8x16xf32>, vector<8x16xf32> -> vector<8x32xf32>
    %116 = arith.truncf %115 : vector<8x32xf32> to vector<8x32xbf16>
    %c0_78 = arith.constant 0 : index
    %c0_79 = arith.constant 0 : index
    %c0_80 = arith.constant 0 : index
    %117 = vector.load %arg12[%c0_78, %c0_79, %c0_80] : memref<2x32x32xbf16, #tpu.memory_space<vmem>>, vector<1x32x32xbf16>
    %118 = vector.shape_cast %117 : vector<1x32x32xbf16> to vector<32x32xbf16>
    %cst_81 = arith.constant dense<0.000000e+00> : vector<8x32xf32>
    %119 = tpu.matmul %116, %118, %cst_81 {dimension_numbers = #tpu.dot_dimension_numbers<[1], [0], [0], [1], [0, 0, 1, 1], [], []>} : vector<8x32xbf16>, vector<32x32xbf16>, vector<8x32xf32> -> vector<8x32xf32>
    %c0_82 = arith.constant 0 : index
    %c0_83 = arith.constant 0 : index
    %c0_84 = arith.constant 0 : index
    %120 = vector.load %arg13[%c0_82, %c0_83, %c0_84] : memref<2x1x32xf32, #tpu.memory_space<vmem>>, vector<1x1x32xf32>
    %121 = vector.shape_cast %120 : vector<1x1x32xf32> to vector<1x32xf32>
    %122 = vector.broadcast %121 : vector<1x32xf32> to vector<8x32xf32>
    %123 = arith.addf %119, %122 : vector<8x32xf32>
    %124 = arith.addf %123, %23 : vector<8x32xf32>
    %c0_85 = arith.constant 0 : index
    %c0_86 = arith.constant 0 : index
    %c0_87 = arith.constant 0 : index
    %125 = vector.load %arg14[%c0_85, %c0_86, %c0_87] : memref<2x1x32xf32, #tpu.memory_space<vmem>>, vector<1x1x32xf32>
    %126 = vector.shape_cast %125 : vector<1x1x32xf32> to vector<1x32xf32>
    %c0_88 = arith.constant 0 : index
    %c0_89 = arith.constant 0 : index
    %c0_90 = arith.constant 0 : index
    %127 = vector.load %arg15[%c0_88, %c0_89, %c0_90] : memref<2x1x32xf32, #tpu.memory_space<vmem>>, vector<1x1x32xf32>
    %128 = vector.shape_cast %127 : vector<1x1x32xf32> to vector<1x32xf32>
    %cst_91 = arith.constant dense<0.000000e+00> : vector<8xf32>
    %129 = vector.multi_reduction <add>, %124, %cst_91 [1] : vector<8x32xf32> to vector<8xf32>
    %130 = vector.shape_cast %129 : vector<8xf32> to vector<8x1xf32>
    %cst_92 = arith.constant 3.200000e+01 : f32
    %131 = vector.broadcast %cst_92 : f32 to vector<8x1xf32>
    %132 = arith.divf %130, %131 : vector<8x1xf32>
    %133 = vector.broadcast %132 : vector<8x1xf32> to vector<8x32xf32>
    %134 = arith.subf %124, %133 : vector<8x32xf32>
    %135 = arith.mulf %134, %134 : vector<8x32xf32>
    %cst_93 = arith.constant dense<0.000000e+00> : vector<8xf32>
    %136 = vector.multi_reduction <add>, %135, %cst_93 [1] : vector<8x32xf32> to vector<8xf32>
    %137 = vector.shape_cast %136 : vector<8xf32> to vector<8x1xf32>
    %cst_94 = arith.constant 3.200000e+01 : f32
    %138 = vector.broadcast %cst_94 : f32 to vector<8x1xf32>
    %139 = arith.divf %137, %138 : vector<8x1xf32>
    %cst_95 = arith.constant 9.99999996E-13 : f32
    %140 = vector.broadcast %cst_95 : f32 to vector<8x1xf32>
    %141 = arith.addf %139, %140 : vector<8x1xf32>
    %142 = math.rsqrt %141 : vector<8x1xf32>
    %143 = vector.broadcast %142 : vector<8x1xf32> to vector<8x32xf32>
    %144 = arith.mulf %134, %143 : vector<8x32xf32>
    %145 = vector.broadcast %126 : vector<1x32xf32> to vector<8x32xf32>
    %146 = arith.mulf %144, %145 : vector<8x32xf32>
    %147 = vector.broadcast %128 : vector<1x32xf32> to vector<8x32xf32>
    %148 = arith.addf %146, %147 : vector<8x32xf32>
    %149 = arith.truncf %148 : vector<8x32xf32> to vector<8x32xbf16>
    %c0_96 = arith.constant 0 : index
    %c0_97 = arith.constant 0 : index
    %c0_98 = arith.constant 0 : index
    %150 = vector.load %arg16[%c0_96, %c0_97, %c0_98] : memref<2x32x64xbf16, #tpu.memory_space<vmem>>, vector<1x32x64xbf16>
    %151 = vector.shape_cast %150 : vector<1x32x64xbf16> to vector<32x64xbf16>
    %cst_99 = arith.constant dense<0.000000e+00> : vector<8x64xf32>
    %152 = tpu.matmul %149, %151, %cst_99 {dimension_numbers = #tpu.dot_dimension_numbers<[1], [0], [0], [1], [0, 0, 1, 1], [], []>} : vector<8x32xbf16>, vector<32x64xbf16>, vector<8x64xf32> -> vector<8x64xf32>
    %c0_100 = arith.constant 0 : index
    %c0_101 = arith.constant 0 : index
    %c0_102 = arith.constant 0 : index
    %153 = vector.load %arg17[%c0_100, %c0_101, %c0_102] : memref<2x1x64xf32, #tpu.memory_space<vmem>>, vector<1x1x64xf32>
    %154 = vector.shape_cast %153 : vector<1x1x64xf32> to vector<1x64xf32>
    %155 = vector.broadcast %154 : vector<1x64xf32> to vector<8x64xf32>
    %156 = arith.addf %152, %155 : vector<8x64xf32>
    %cst_103 = arith.constant 5.000000e-01 : f32
    %157 = vector.broadcast %cst_103 : f32 to vector<8x64xf32>
    %158 = arith.mulf %157, %156 : vector<8x64xf32>
    %cst_104 = arith.constant 4.471500e-02 : f32
    %159 = vector.broadcast %cst_104 : f32 to vector<8x64xf32>
    %160 = arith.mulf %159, %156 : vector<8x64xf32>
    %161 = arith.mulf %160, %156 : vector<8x64xf32>
    %162 = arith.mulf %161, %156 : vector<8x64xf32>
    %163 = arith.addf %156, %162 : vector<8x64xf32>
    %cst_105 = arith.constant 0.797884583 : f32
    %164 = vector.broadcast %cst_105 : f32 to vector<8x64xf32>
    %165 = arith.mulf %164, %163 : vector<8x64xf32>
    %166 = math.tanh %165 : vector<8x64xf32>
    %cst_106 = arith.constant 1.000000e+00 : f32
    %167 = vector.broadcast %cst_106 : f32 to vector<8x64xf32>
    %168 = arith.addf %167, %166 : vector<8x64xf32>
    %169 = arith.mulf %158, %168 : vector<8x64xf32>
    %170 = arith.truncf %169 : vector<8x64xf32> to vector<8x64xbf16>
    %c0_107 = arith.constant 0 : index
    %c0_108 = arith.constant 0 : index
    %c0_109 = arith.constant 0 : index
    %171 = vector.load %arg18[%c0_107, %c0_108, %c0_109] : memref<2x64x32xbf16, #tpu.memory_space<vmem>>, vector<1x64x32xbf16>
    %172 = vector.shape_cast %171 : vector<1x64x32xbf16> to vector<64x32xbf16>
    %cst_110 = arith.constant dense<0.000000e+00> : vector<8x32xf32>
    %173 = tpu.matmul %170, %172, %cst_110 {dimension_numbers = #tpu.dot_dimension_numbers<[1], [0], [0], [1], [0, 0, 1, 1], [], []>} : vector<8x64xbf16>, vector<64x32xbf16>, vector<8x32xf32> -> vector<8x32xf32>
    %c0_111 = arith.constant 0 : index
    %c0_112 = arith.constant 0 : index
    %c0_113 = arith.constant 0 : index
    %174 = vector.load %arg19[%c0_111, %c0_112, %c0_113] : memref<2x1x32xf32, #tpu.memory_space<vmem>>, vector<1x1x32xf32>
    %175 = vector.shape_cast %174 : vector<1x1x32xf32> to vector<1x32xf32>
    %176 = vector.broadcast %175 : vector<1x32xf32> to vector<8x32xf32>
    %177 = arith.addf %173, %176 : vector<8x32xf32>
    %178 = arith.addf %177, %148 : vector<8x32xf32>
    %c0_114 = arith.constant 0 : index
    %c0_115 = arith.constant 0 : index
    %c0_116 = arith.constant 0 : index
    %179 = vector.load %arg20[%c0_114, %c0_115, %c0_116] : memref<2x1x32xf32, #tpu.memory_space<vmem>>, vector<1x1x32xf32>
    %180 = vector.shape_cast %179 : vector<1x1x32xf32> to vector<1x32xf32>
    %c0_117 = arith.constant 0 : index
    %c0_118 = arith.constant 0 : index
    %c0_119 = arith.constant 0 : index
    %181 = vector.load %arg21[%c0_117, %c0_118, %c0_119] : memref<2x1x32xf32, #tpu.memory_space<vmem>>, vector<1x1x32xf32>
    %182 = vector.shape_cast %181 : vector<1x1x32xf32> to vector<1x32xf32>
    %cst_120 = arith.constant dense<0.000000e+00> : vector<8xf32>
    %183 = vector.multi_reduction <add>, %178, %cst_120 [1] : vector<8x32xf32> to vector<8xf32>
    %184 = vector.shape_cast %183 : vector<8xf32> to vector<8x1xf32>
    %cst_121 = arith.constant 3.200000e+01 : f32
    %185 = vector.broadcast %cst_121 : f32 to vector<8x1xf32>
    %186 = arith.divf %184, %185 : vector<8x1xf32>
    %187 = vector.broadcast %186 : vector<8x1xf32> to vector<8x32xf32>
    %188 = arith.subf %178, %187 : vector<8x32xf32>
    %189 = arith.mulf %188, %188 : vector<8x32xf32>
    %cst_122 = arith.constant dense<0.000000e+00> : vector<8xf32>
    %190 = vector.multi_reduction <add>, %189, %cst_122 [1] : vector<8x32xf32> to vector<8xf32>
    %191 = vector.shape_cast %190 : vector<8xf32> to vector<8x1xf32>
    %cst_123 = arith.constant 3.200000e+01 : f32
    %192 = vector.broadcast %cst_123 : f32 to vector<8x1xf32>
    %193 = arith.divf %191, %192 : vector<8x1xf32>
    %cst_124 = arith.constant 9.99999996E-13 : f32
    %194 = vector.broadcast %cst_124 : f32 to vector<8x1xf32>
    %195 = arith.addf %193, %194 : vector<8x1xf32>
    %196 = math.rsqrt %195 : vector<8x1xf32>
    %197 = vector.broadcast %196 : vector<8x1xf32> to vector<8x32xf32>
    %198 = arith.mulf %188, %197 : vector<8x32xf32>
    %199 = vector.broadcast %180 : vector<1x32xf32> to vector<8x32xf32>
    %200 = arith.mulf %198, %199 : vector<8x32xf32>
    %201 = vector.broadcast %182 : vector<1x32xf32> to vector<8x32xf32>
    %202 = arith.addf %200, %201 : vector<8x32xf32>
    %203 = arith.truncf %202 : vector<8x32xf32> to vector<8x32xbf16>
    %204 = tpu.transpose %202, [1, 0] : vector<8x32xf32> -> vector<32x8xf32>
    %205 = arith.truncf %204 : vector<32x8xf32> to vector<32x8xbf16>
    %c1_125 = arith.constant 1 : index
    %c0_126 = arith.constant 0 : index
    %c0_127 = arith.constant 0 : index
    %c0_128 = arith.constant 0 : index
    %206 = vector.load %arg6[%c1_125, %c0_126, %c0_127, %c0_128] : memref<2x2x32x16xbf16, #tpu.memory_space<vmem>>, vector<1x1x32x16xbf16>
    %207 = vector.shape_cast %206 : vector<1x1x32x16xbf16> to vector<32x16xbf16>
    %cst_129 = arith.constant dense<0.000000e+00> : vector<8x16xf32>
    %208 = tpu.matmul %203, %207, %cst_129 {dimension_numbers = #tpu.dot_dimension_numbers<[1], [0], [0], [1], [0, 0, 1, 1], [], []>} : vector<8x32xbf16>, vector<32x16xbf16>, vector<8x16xf32> -> vector<8x16xf32>
    %c1_130 = arith.constant 1 : index
    %c0_131 = arith.constant 0 : index
    %c0_132 = arith.constant 0 : index
    %c0_133 = arith.constant 0 : index
    %209 = vector.load %arg7[%c1_130, %c0_131, %c0_132, %c0_133] : memref<2x2x1x16xf32, #tpu.memory_space<vmem>>, vector<1x1x1x16xf32>
    %210 = vector.shape_cast %209 : vector<1x1x1x16xf32> to vector<1x16xf32>
    %211 = vector.broadcast %210 : vector<1x16xf32> to vector<8x16xf32>
    %212 = arith.addf %208, %211 : vector<8x16xf32>
    %c1_134 = arith.constant 1 : index
    %c0_135 = arith.constant 0 : index
    %c0_136 = arith.constant 0 : index
    %c0_137 = arith.constant 0 : index
    %213 = vector.load %arg8[%c1_134, %c0_135, %c0_136, %c0_137] : memref<2x2x16x32xbf16, #tpu.memory_space<vmem>>, vector<1x1x16x32xbf16>
    %214 = vector.shape_cast %213 : vector<1x1x16x32xbf16> to vector<16x32xbf16>
    %cst_138 = arith.constant dense<0.000000e+00> : vector<16x8xf32>
    %215 = tpu.matmul %214, %205, %cst_138 {dimension_numbers = #tpu.dot_dimension_numbers<[1], [0], [0], [1], [0, 0, 1, 1], [], []>} : vector<16x32xbf16>, vector<32x8xbf16>, vector<16x8xf32> -> vector<16x8xf32>
    %c1_139 = arith.constant 1 : index
    %c0_140 = arith.constant 0 : index
    %c0_141 = arith.constant 0 : index
    %c0_142 = arith.constant 0 : index
    %216 = vector.load %arg9[%c1_139, %c0_140, %c0_141, %c0_142] : memref<2x2x16x1xf32, #tpu.memory_space<vmem>>, vector<1x1x16x1xf32>
    %217 = vector.shape_cast %216 : vector<1x1x16x1xf32> to vector<16x1xf32>
    %218 = vector.broadcast %217 : vector<16x1xf32> to vector<16x8xf32>
    %219 = arith.addf %215, %218 : vector<16x8xf32>
    %c1_143 = arith.constant 1 : index
    %c0_144 = arith.constant 0 : index
    %c0_145 = arith.constant 0 : index
    %c0_146 = arith.constant 0 : index
    %220 = vector.load %arg10[%c1_143, %c0_144, %c0_145, %c0_146] : memref<2x2x32x16xbf16, #tpu.memory_space<vmem>>, vector<1x1x32x16xbf16>
    %221 = vector.shape_cast %220 : vector<1x1x32x16xbf16> to vector<32x16xbf16>
    %cst_147 = arith.constant dense<0.000000e+00> : vector<8x16xf32>
    %222 = tpu.matmul %203, %221, %cst_147 {dimension_numbers = #tpu.dot_dimension_numbers<[1], [0], [0], [1], [0, 0, 1, 1], [], []>} : vector<8x32xbf16>, vector<32x16xbf16>, vector<8x16xf32> -> vector<8x16xf32>
    %c1_148 = arith.constant 1 : index
    %c0_149 = arith.constant 0 : index
    %c0_150 = arith.constant 0 : index
    %c0_151 = arith.constant 0 : index
    %223 = vector.load %arg11[%c1_148, %c0_149, %c0_150, %c0_151] : memref<2x2x1x16xf32, #tpu.memory_space<vmem>>, vector<1x1x1x16xf32>
    %224 = vector.shape_cast %223 : vector<1x1x1x16xf32> to vector<1x16xf32>
    %225 = vector.broadcast %224 : vector<1x16xf32> to vector<8x16xf32>
    %226 = arith.addf %222, %225 : vector<8x16xf32>
    %227 = arith.truncf %212 : vector<8x16xf32> to vector<8x16xbf16>
    %228 = arith.truncf %219 : vector<16x8xf32> to vector<16x8xbf16>
    %cst_152 = arith.constant dense<0.000000e+00> : vector<8x8xf32>
    %229 = tpu.matmul %227, %228, %cst_152 {dimension_numbers = #tpu.dot_dimension_numbers<[1], [0], [0], [1], [0, 0, 1, 1], [], []>} : vector<8x16xbf16>, vector<16x8xbf16>, vector<8x8xf32> -> vector<8x8xf32>
    %cst_153 = arith.constant 2.500000e-01 : f32
    %230 = vector.broadcast %cst_153 : f32 to vector<8x8xf32>
    %231 = arith.mulf %229, %230 : vector<8x8xf32>
    %232 = arith.addf %231, %31 : vector<8x8xf32>
    %cst_154 = arith.constant dense<0xFF800000> : vector<8xf32>
    %233 = vector.multi_reduction <maximumf>, %232, %cst_154 [1] : vector<8x8xf32> to vector<8xf32>
    %234 = vector.shape_cast %233 : vector<8xf32> to vector<8x1xf32>
    %235 = vector.broadcast %234 : vector<8x1xf32> to vector<8x8xf32>
    %236 = arith.subf %232, %235 : vector<8x8xf32>
    %237 = math.exp %236 : vector<8x8xf32>
    %cst_155 = arith.constant dense<0.000000e+00> : vector<8xf32>
    %238 = vector.multi_reduction <add>, %237, %cst_155 [1] : vector<8x8xf32> to vector<8xf32>
    %239 = vector.shape_cast %238 : vector<8xf32> to vector<8x1xf32>
    %240 = tpu.reciprocal %239 {approx = true} : vector<8x1xf32> -> vector<8x1xf32>
    %241 = vector.broadcast %240 : vector<8x1xf32> to vector<8x8xf32>
    %242 = arith.mulf %237, %241 : vector<8x8xf32>
    %243 = arith.truncf %242 : vector<8x8xf32> to vector<8x8xbf16>
    %244 = arith.truncf %226 : vector<8x16xf32> to vector<8x16xbf16>
    %cst_156 = arith.constant dense<0.000000e+00> : vector<8x16xf32>
    %245 = tpu.matmul %243, %244, %cst_156 {dimension_numbers = #tpu.dot_dimension_numbers<[1], [0], [0], [1], [0, 0, 1, 1], [], []>} : vector<8x8xbf16>, vector<8x16xbf16>, vector<8x16xf32> -> vector<8x16xf32>
    %c1_157 = arith.constant 1 : index
    %c1_158 = arith.constant 1 : index
    %c0_159 = arith.constant 0 : index
    %c0_160 = arith.constant 0 : index
    %246 = vector.load %arg6[%c1_157, %c1_158, %c0_159, %c0_160] : memref<2x2x32x16xbf16, #tpu.memory_space<vmem>>, vector<1x1x32x16xbf16>
    %247 = vector.shape_cast %246 : vector<1x1x32x16xbf16> to vector<32x16xbf16>
    %cst_161 = arith.constant dense<0.000000e+00> : vector<8x16xf32>
    %248 = tpu.matmul %203, %247, %cst_161 {dimension_numbers = #tpu.dot_dimension_numbers<[1], [0], [0], [1], [0, 0, 1, 1], [], []>} : vector<8x32xbf16>, vector<32x16xbf16>, vector<8x16xf32> -> vector<8x16xf32>
    %c1_162 = arith.constant 1 : index
    %c1_163 = arith.constant 1 : index
    %c0_164 = arith.constant 0 : index
    %c0_165 = arith.constant 0 : index
    %249 = vector.load %arg7[%c1_162, %c1_163, %c0_164, %c0_165] : memref<2x2x1x16xf32, #tpu.memory_space<vmem>>, vector<1x1x1x16xf32>
    %250 = vector.shape_cast %249 : vector<1x1x1x16xf32> to vector<1x16xf32>
    %251 = vector.broadcast %250 : vector<1x16xf32> to vector<8x16xf32>
    %252 = arith.addf %248, %251 : vector<8x16xf32>
    %c1_166 = arith.constant 1 : index
    %c1_167 = arith.constant 1 : index
    %c0_168 = arith.constant 0 : index
    %c0_169 = arith.constant 0 : index
    %253 = vector.load %arg8[%c1_166, %c1_167, %c0_168, %c0_169] : memref<2x2x16x32xbf16, #tpu.memory_space<vmem>>, vector<1x1x16x32xbf16>
    %254 = vector.shape_cast %253 : vector<1x1x16x32xbf16> to vector<16x32xbf16>
    %cst_170 = arith.constant dense<0.000000e+00> : vector<16x8xf32>
    %255 = tpu.matmul %254, %205, %cst_170 {dimension_numbers = #tpu.dot_dimension_numbers<[1], [0], [0], [1], [0, 0, 1, 1], [], []>} : vector<16x32xbf16>, vector<32x8xbf16>, vector<16x8xf32> -> vector<16x8xf32>
    %c1_171 = arith.constant 1 : index
    %c1_172 = arith.constant 1 : index
    %c0_173 = arith.constant 0 : index
    %c0_174 = arith.constant 0 : index
    %256 = vector.load %arg9[%c1_171, %c1_172, %c0_173, %c0_174] : memref<2x2x16x1xf32, #tpu.memory_space<vmem>>, vector<1x1x16x1xf32>
    %257 = vector.shape_cast %256 : vector<1x1x16x1xf32> to vector<16x1xf32>
    %258 = vector.broadcast %257 : vector<16x1xf32> to vector<16x8xf32>
    %259 = arith.addf %255, %258 : vector<16x8xf32>
    %c1_175 = arith.constant 1 : index
    %c1_176 = arith.constant 1 : index
    %c0_177 = arith.constant 0 : index
    %c0_178 = arith.constant 0 : index
    %260 = vector.load %arg10[%c1_175, %c1_176, %c0_177, %c0_178] : memref<2x2x32x16xbf16, #tpu.memory_space<vmem>>, vector<1x1x32x16xbf16>
    %261 = vector.shape_cast %260 : vector<1x1x32x16xbf16> to vector<32x16xbf16>
    %cst_179 = arith.constant dense<0.000000e+00> : vector<8x16xf32>
    %262 = tpu.matmul %203, %261, %cst_179 {dimension_numbers = #tpu.dot_dimension_numbers<[1], [0], [0], [1], [0, 0, 1, 1], [], []>} : vector<8x32xbf16>, vector<32x16xbf16>, vector<8x16xf32> -> vector<8x16xf32>
    %c1_180 = arith.constant 1 : index
    %c1_181 = arith.constant 1 : index
    %c0_182 = arith.constant 0 : index
    %c0_183 = arith.constant 0 : index
    %263 = vector.load %arg11[%c1_180, %c1_181, %c0_182, %c0_183] : memref<2x2x1x16xf32, #tpu.memory_space<vmem>>, vector<1x1x1x16xf32>
    %264 = vector.shape_cast %263 : vector<1x1x1x16xf32> to vector<1x16xf32>
    %265 = vector.broadcast %264 : vector<1x16xf32> to vector<8x16xf32>
    %266 = arith.addf %262, %265 : vector<8x16xf32>
    %267 = arith.truncf %252 : vector<8x16xf32> to vector<8x16xbf16>
    %268 = arith.truncf %259 : vector<16x8xf32> to vector<16x8xbf16>
    %cst_184 = arith.constant dense<0.000000e+00> : vector<8x8xf32>
    %269 = tpu.matmul %267, %268, %cst_184 {dimension_numbers = #tpu.dot_dimension_numbers<[1], [0], [0], [1], [0, 0, 1, 1], [], []>} : vector<8x16xbf16>, vector<16x8xbf16>, vector<8x8xf32> -> vector<8x8xf32>
    %cst_185 = arith.constant 2.500000e-01 : f32
    %270 = vector.broadcast %cst_185 : f32 to vector<8x8xf32>
    %271 = arith.mulf %269, %270 : vector<8x8xf32>
    %272 = arith.addf %271, %31 : vector<8x8xf32>
    %cst_186 = arith.constant dense<0xFF800000> : vector<8xf32>
    %273 = vector.multi_reduction <maximumf>, %272, %cst_186 [1] : vector<8x8xf32> to vector<8xf32>
    %274 = vector.shape_cast %273 : vector<8xf32> to vector<8x1xf32>
    %275 = vector.broadcast %274 : vector<8x1xf32> to vector<8x8xf32>
    %276 = arith.subf %272, %275 : vector<8x8xf32>
    %277 = math.exp %276 : vector<8x8xf32>
    %cst_187 = arith.constant dense<0.000000e+00> : vector<8xf32>
    %278 = vector.multi_reduction <add>, %277, %cst_187 [1] : vector<8x8xf32> to vector<8xf32>
    %279 = vector.shape_cast %278 : vector<8xf32> to vector<8x1xf32>
    %280 = tpu.reciprocal %279 {approx = true} : vector<8x1xf32> -> vector<8x1xf32>
    %281 = vector.broadcast %280 : vector<8x1xf32> to vector<8x8xf32>
    %282 = arith.mulf %277, %281 : vector<8x8xf32>
    %283 = arith.truncf %282 : vector<8x8xf32> to vector<8x8xbf16>
    %284 = arith.truncf %266 : vector<8x16xf32> to vector<8x16xbf16>
    %cst_188 = arith.constant dense<0.000000e+00> : vector<8x16xf32>
    %285 = tpu.matmul %283, %284, %cst_188 {dimension_numbers = #tpu.dot_dimension_numbers<[1], [0], [0], [1], [0, 0, 1, 1], [], []>} : vector<8x8xbf16>, vector<8x16xbf16>, vector<8x16xf32> -> vector<8x16xf32>
    %286 = tpu.concatenate %245, %285 in 1 : vector<8x16xf32>, vector<8x16xf32> -> vector<8x32xf32>
    %287 = arith.truncf %286 : vector<8x32xf32> to vector<8x32xbf16>
    %c1_189 = arith.constant 1 : index
    %c0_190 = arith.constant 0 : index
    %c0_191 = arith.constant 0 : index
    %288 = vector.load %arg12[%c1_189, %c0_190, %c0_191] : memref<2x32x32xbf16, #tpu.memory_space<vmem>>, vector<1x32x32xbf16>
    %289 = vector.shape_cast %288 : vector<1x32x32xbf16> to vector<32x32xbf16>
    %cst_192 = arith.constant dense<0.000000e+00> : vector<8x32xf32>
    %290 = tpu.matmul %287, %289, %cst_192 {dimension_numbers = #tpu.dot_dimension_numbers<[1], [0], [0], [1], [0, 0, 1, 1], [], []>} : vector<8x32xbf16>, vector<32x32xbf16>, vector<8x32xf32> -> vector<8x32xf32>
    %c1_193 = arith.constant 1 : index
    %c0_194 = arith.constant 0 : index
    %c0_195 = arith.constant 0 : index
    %291 = vector.load %arg13[%c1_193, %c0_194, %c0_195] : memref<2x1x32xf32, #tpu.memory_space<vmem>>, vector<1x1x32xf32>
    %292 = vector.shape_cast %291 : vector<1x1x32xf32> to vector<1x32xf32>
    %293 = vector.broadcast %292 : vector<1x32xf32> to vector<8x32xf32>
    %294 = arith.addf %290, %293 : vector<8x32xf32>
    %295 = arith.addf %294, %202 : vector<8x32xf32>
    %c1_196 = arith.constant 1 : index
    %c0_197 = arith.constant 0 : index
    %c0_198 = arith.constant 0 : index
    %296 = vector.load %arg14[%c1_196, %c0_197, %c0_198] : memref<2x1x32xf32, #tpu.memory_space<vmem>>, vector<1x1x32xf32>
    %297 = vector.shape_cast %296 : vector<1x1x32xf32> to vector<1x32xf32>
    %c1_199 = arith.constant 1 : index
    %c0_200 = arith.constant 0 : index
    %c0_201 = arith.constant 0 : index
    %298 = vector.load %arg15[%c1_199, %c0_200, %c0_201] : memref<2x1x32xf32, #tpu.memory_space<vmem>>, vector<1x1x32xf32>
    %299 = vector.shape_cast %298 : vector<1x1x32xf32> to vector<1x32xf32>
    %cst_202 = arith.constant dense<0.000000e+00> : vector<8xf32>
    %300 = vector.multi_reduction <add>, %295, %cst_202 [1] : vector<8x32xf32> to vector<8xf32>
    %301 = vector.shape_cast %300 : vector<8xf32> to vector<8x1xf32>
    %cst_203 = arith.constant 3.200000e+01 : f32
    %302 = vector.broadcast %cst_203 : f32 to vector<8x1xf32>
    %303 = arith.divf %301, %302 : vector<8x1xf32>
    %304 = vector.broadcast %303 : vector<8x1xf32> to vector<8x32xf32>
    %305 = arith.subf %295, %304 : vector<8x32xf32>
    %306 = arith.mulf %305, %305 : vector<8x32xf32>
    %cst_204 = arith.constant dense<0.000000e+00> : vector<8xf32>
    %307 = vector.multi_reduction <add>, %306, %cst_204 [1] : vector<8x32xf32> to vector<8xf32>
    %308 = vector.shape_cast %307 : vector<8xf32> to vector<8x1xf32>
    %cst_205 = arith.constant 3.200000e+01 : f32
    %309 = vector.broadcast %cst_205 : f32 to vector<8x1xf32>
    %310 = arith.divf %308, %309 : vector<8x1xf32>
    %cst_206 = arith.constant 9.99999996E-13 : f32
    %311 = vector.broadcast %cst_206 : f32 to vector<8x1xf32>
    %312 = arith.addf %310, %311 : vector<8x1xf32>
    %313 = math.rsqrt %312 : vector<8x1xf32>
    %314 = vector.broadcast %313 : vector<8x1xf32> to vector<8x32xf32>
    %315 = arith.mulf %305, %314 : vector<8x32xf32>
    %316 = vector.broadcast %297 : vector<1x32xf32> to vector<8x32xf32>
    %317 = arith.mulf %315, %316 : vector<8x32xf32>
    %318 = vector.broadcast %299 : vector<1x32xf32> to vector<8x32xf32>
    %319 = arith.addf %317, %318 : vector<8x32xf32>
    %320 = arith.truncf %319 : vector<8x32xf32> to vector<8x32xbf16>
    %c1_207 = arith.constant 1 : index
    %c0_208 = arith.constant 0 : index
    %c0_209 = arith.constant 0 : index
    %321 = vector.load %arg16[%c1_207, %c0_208, %c0_209] : memref<2x32x64xbf16, #tpu.memory_space<vmem>>, vector<1x32x64xbf16>
    %322 = vector.shape_cast %321 : vector<1x32x64xbf16> to vector<32x64xbf16>
    %cst_210 = arith.constant dense<0.000000e+00> : vector<8x64xf32>
    %323 = tpu.matmul %320, %322, %cst_210 {dimension_numbers = #tpu.dot_dimension_numbers<[1], [0], [0], [1], [0, 0, 1, 1], [], []>} : vector<8x32xbf16>, vector<32x64xbf16>, vector<8x64xf32> -> vector<8x64xf32>
    %c1_211 = arith.constant 1 : index
    %c0_212 = arith.constant 0 : index
    %c0_213 = arith.constant 0 : index
    %324 = vector.load %arg17[%c1_211, %c0_212, %c0_213] : memref<2x1x64xf32, #tpu.memory_space<vmem>>, vector<1x1x64xf32>
    %325 = vector.shape_cast %324 : vector<1x1x64xf32> to vector<1x64xf32>
    %326 = vector.broadcast %325 : vector<1x64xf32> to vector<8x64xf32>
    %327 = arith.addf %323, %326 : vector<8x64xf32>
    %cst_214 = arith.constant 5.000000e-01 : f32
    %328 = vector.broadcast %cst_214 : f32 to vector<8x64xf32>
    %329 = arith.mulf %328, %327 : vector<8x64xf32>
    %cst_215 = arith.constant 4.471500e-02 : f32
    %330 = vector.broadcast %cst_215 : f32 to vector<8x64xf32>
    %331 = arith.mulf %330, %327 : vector<8x64xf32>
    %332 = arith.mulf %331, %327 : vector<8x64xf32>
    %333 = arith.mulf %332, %327 : vector<8x64xf32>
    %334 = arith.addf %327, %333 : vector<8x64xf32>
    %cst_216 = arith.constant 0.797884583 : f32
    %335 = vector.broadcast %cst_216 : f32 to vector<8x64xf32>
    %336 = arith.mulf %335, %334 : vector<8x64xf32>
    %337 = math.tanh %336 : vector<8x64xf32>
    %cst_217 = arith.constant 1.000000e+00 : f32
    %338 = vector.broadcast %cst_217 : f32 to vector<8x64xf32>
    %339 = arith.addf %338, %337 : vector<8x64xf32>
    %340 = arith.mulf %329, %339 : vector<8x64xf32>
    %341 = arith.truncf %340 : vector<8x64xf32> to vector<8x64xbf16>
    %c1_218 = arith.constant 1 : index
    %c0_219 = arith.constant 0 : index
    %c0_220 = arith.constant 0 : index
    %342 = vector.load %arg18[%c1_218, %c0_219, %c0_220] : memref<2x64x32xbf16, #tpu.memory_space<vmem>>, vector<1x64x32xbf16>
    %343 = vector.shape_cast %342 : vector<1x64x32xbf16> to vector<64x32xbf16>
    %cst_221 = arith.constant dense<0.000000e+00> : vector<8x32xf32>
    %344 = tpu.matmul %341, %343, %cst_221 {dimension_numbers = #tpu.dot_dimension_numbers<[1], [0], [0], [1], [0, 0, 1, 1], [], []>} : vector<8x64xbf16>, vector<64x32xbf16>, vector<8x32xf32> -> vector<8x32xf32>
    %c1_222 = arith.constant 1 : index
    %c0_223 = arith.constant 0 : index
    %c0_224 = arith.constant 0 : index
    %345 = vector.load %arg19[%c1_222, %c0_223, %c0_224] : memref<2x1x32xf32, #tpu.memory_space<vmem>>, vector<1x1x32xf32>
    %346 = vector.shape_cast %345 : vector<1x1x32xf32> to vector<1x32xf32>
    %347 = vector.broadcast %346 : vector<1x32xf32> to vector<8x32xf32>
    %348 = arith.addf %344, %347 : vector<8x32xf32>
    %349 = arith.addf %348, %319 : vector<8x32xf32>
    %c1_225 = arith.constant 1 : index
    %c0_226 = arith.constant 0 : index
    %c0_227 = arith.constant 0 : index
    %350 = vector.load %arg20[%c1_225, %c0_226, %c0_227] : memref<2x1x32xf32, #tpu.memory_space<vmem>>, vector<1x1x32xf32>
    %351 = vector.shape_cast %350 : vector<1x1x32xf32> to vector<1x32xf32>
    %c1_228 = arith.constant 1 : index
    %c0_229 = arith.constant 0 : index
    %c0_230 = arith.constant 0 : index
    %352 = vector.load %arg21[%c1_228, %c0_229, %c0_230] : memref<2x1x32xf32, #tpu.memory_space<vmem>>, vector<1x1x32xf32>
    %353 = vector.shape_cast %352 : vector<1x1x32xf32> to vector<1x32xf32>
    %cst_231 = arith.constant dense<0.000000e+00> : vector<8xf32>
    %354 = vector.multi_reduction <add>, %349, %cst_231 [1] : vector<8x32xf32> to vector<8xf32>
    %355 = vector.shape_cast %354 : vector<8xf32> to vector<8x1xf32>
    %cst_232 = arith.constant 3.200000e+01 : f32
    %356 = vector.broadcast %cst_232 : f32 to vector<8x1xf32>
    %357 = arith.divf %355, %356 : vector<8x1xf32>
    %358 = vector.broadcast %357 : vector<8x1xf32> to vector<8x32xf32>
    %359 = arith.subf %349, %358 : vector<8x32xf32>
    %360 = arith.mulf %359, %359 : vector<8x32xf32>
    %cst_233 = arith.constant dense<0.000000e+00> : vector<8xf32>
    %361 = vector.multi_reduction <add>, %360, %cst_233 [1] : vector<8x32xf32> to vector<8xf32>
    %362 = vector.shape_cast %361 : vector<8xf32> to vector<8x1xf32>
    %cst_234 = arith.constant 3.200000e+01 : f32
    %363 = vector.broadcast %cst_234 : f32 to vector<8x1xf32>
    %364 = arith.divf %362, %363 : vector<8x1xf32>
    %cst_235 = arith.constant 9.99999996E-13 : f32
    %365 = vector.broadcast %cst_235 : f32 to vector<8x1xf32>
    %366 = arith.addf %364, %365 : vector<8x1xf32>
    %367 = math.rsqrt %366 : vector<8x1xf32>
    %368 = vector.broadcast %367 : vector<8x1xf32> to vector<8x32xf32>
    %369 = arith.mulf %359, %368 : vector<8x32xf32>
    %370 = vector.broadcast %351 : vector<1x32xf32> to vector<8x32xf32>
    %371 = arith.mulf %369, %370 : vector<8x32xf32>
    %372 = vector.broadcast %353 : vector<1x32xf32> to vector<8x32xf32>
    %373 = arith.addf %371, %372 : vector<8x32xf32>
    %374 = vector.extract_strided_slice %373 {offsets = [0, 0], sizes = [1, 32], strides = [1, 1]} : vector<8x32xf32> to vector<1x32xf32>
    %375 = arith.truncf %374 : vector<1x32xf32> to vector<1x32xbf16>
    %c0_236 = arith.constant 0 : index
    %c0_237 = arith.constant 0 : index
    %376 = vector.load %arg22[%c0_236, %c0_237] : memref<32x128xbf16, #tpu.memory_space<vmem>>, vector<32x128xbf16>
    %cst_238 = arith.constant dense<0.000000e+00> : vector<1x128xf32>
    %377 = tpu.matmul %375, %376, %cst_238 {dimension_numbers = #tpu.dot_dimension_numbers<[1], [0], [0], [1], [0, 0, 1, 1], [], []>} : vector<1x32xbf16>, vector<32x128xbf16>, vector<1x128xf32> -> vector<1x128xf32>
    %c0_239 = arith.constant 0 : index
    %c0_240 = arith.constant 0 : index
    %378 = vector.load %arg23[%c0_239, %c0_240] : memref<1x128xf32, #tpu.memory_space<vmem>>, vector<1x128xf32>
    %379 = arith.addf %377, %378 : vector<1x128xf32>
    %380 = tpu.iota {dimensions = array<i32: 1>} : vector<1x128xi32>
    %c3_i32 = arith.constant 3 : i32
    %381 = vector.broadcast %c3_i32 : i32 to vector<1x128xi32>
    %382 = arith.cmpi slt, %380, %381 : vector<1x128xi32>
    %cst_241 = arith.constant -1.000000e+30 : f32
    %383 = vector.broadcast %cst_241 : f32 to vector<1x128xf32>
    %384 = arith.select %382, %379, %383 : vector<1x128xi1>, vector<1x128xf32>
    %cst_242 = arith.constant dense<0xFF800000> : vector<1xf32>
    %385 = vector.multi_reduction <maximumf>, %384, %cst_242 [1] : vector<1x128xf32> to vector<1xf32>
    %386 = vector.shape_cast %385 : vector<1xf32> to vector<1x1xf32>
    %387 = vector.broadcast %386 : vector<1x1xf32> to vector<1x128xf32>
    %388 = arith.subf %384, %387 : vector<1x128xf32>
    %389 = math.exp %388 : vector<1x128xf32>
    %cst_243 = arith.constant dense<0.000000e+00> : vector<1xf32>
    %390 = vector.multi_reduction <add>, %389, %cst_243 [1] : vector<1x128xf32> to vector<1xf32>
    %391 = vector.shape_cast %390 : vector<1xf32> to vector<1x1xf32>
    %392 = math.log %391 : vector<1x1xf32>
    %393 = arith.addf %392, %386 : vector<1x1xf32>
    %394 = arith.index_cast %arg0 : i32 to index
    %395 = memref.load %arg3[%394] : memref<2xi32, #tpu.memory_space<smem>>
    %396 = vector.broadcast %395 : i32 to vector<1x128xi32>
    %397 = arith.cmpi eq, %380, %396 : vector<1x128xi32>
    %cst_244 = arith.constant 0.000000e+00 : f32
    %398 = vector.broadcast %cst_244 : f32 to vector<1x128xf32>
    %399 = arith.select %397, %379, %398 : vector<1x128xi1>, vector<1x128xf32>
    %cst_245 = arith.constant dense<0.000000e+00> : vector<1xf32>
    %400 = vector.multi_reduction <add>, %399, %cst_245 [1] : vector<1x128xf32> to vector<1xf32>
    %401 = vector.shape_cast %400 : vector<1xf32> to vector<1x1xf32>
    %402 = arith.subf %393, %401 : vector<1x1xf32>
    %c127_i32 = arith.constant 127 : i32
    %403 = vector.broadcast %c127_i32 : i32 to vector<1x128xi32>
    %404 = arith.cmpi eq, %380, %403 : vector<1x128xi32>
    %405 = vector.shape_cast %402 : vector<1x1xf32> to vector<1x1xf32>
    %406 = vector.broadcast %405 : vector<1x1xf32> to vector<1x128xf32>
    %407 = arith.select %404, %406, %379 : vector<1x128xi1>, vector<1x128xf32>
    %c0_246 = arith.constant 0 : index
    %c0_247 = arith.constant 0 : index
    %c0_248 = arith.constant 0 : index
    %408 = vector.load %arg24[%c0_246, %c0_247, %c0_248] : memref<1x1x128xf32, #tpu.memory_space<vmem>>, vector<1x1x128xf32>
    %409 = vector.shape_cast %408 : vector<1x1x128xf32> to vector<1x128xf32>
    %410 = vector.shape_cast %407 : vector<1x128xf32> to vector<1x1x128xf32>
    tpu.vector_store %arg24[%c0_246, %c0_247, %c0_248], %410 {strides = array<i32>} : memref<1x1x128xf32, #tpu.memory_space<vmem>>, vector<1x1x128xf32>,
    return
  }
  func.func @transform_0(%arg0: i32) -> (i32, i32, i32) {
    %c0_i32 = arith.constant 0 : i32
    %c0_i32_0 = arith.constant 0 : i32
    %c0_i32_1 = arith.constant 0 : i32
    return %arg0, %c0_i32, %c0_i32_0 : i32, i32, i32
  }
  func.func @transform_1(%arg0: i32) -> (i32, i32, i32) {
    %c0_i32 = arith.constant 0 : i32
    %c0_i32_0 = arith.constant 0 : i32
    %c0_i32_1 = arith.constant 0 : i32
    return %arg0, %c0_i32, %c0_i32_0 : i32, i32, i32
  }
  func.func @transform_2(%arg0: i32) -> i32 {
    %c0_i32 = arith.constant 0 : i32
    %c0_i32_0 = arith.constant 0 : i32
    return %c0_i32 : i32
  }
  func.func @transform_3(%arg0: i32) -> (i32, i32) {
    %c0_i32 = arith.constant 0 : i32
    %c0_i32_0 = arith.constant 0 : i32
    %c0_i32_1 = arith.constant 0 : i32
    return %c0_i32, %c0_i32_0 : i32, i32
  }
  func.func @transform_4(%arg0: i32) -> (i32, i32) {
    %c0_i32 = arith.constant 0 : i32
    %c0_i32_0 = arith.constant 0 : i32
    %c0_i32_1 = arith.constant 0 : i32
    return %c0_i32, %c0_i32_0 : i32, i32
  }
  func.func @transform_5(%arg0: i32) -> (i32, i32, i32, i32) {
    %c0_i32 = arith.constant 0 : i32
    %c0_i32_0 = arith.constant 0 : i32
    %c0_i32_1 = arith.constant 0 : i32
    %c0_i32_2 = arith.constant 0 : i32
    %c0_i32_3 = arith.constant 0 : i32
    return %c0_i32, %c0_i32_0, %c0_i32_1, %c0_i32_2 : i32, i32, i32, i32
  }
  func.func @transform_6(%arg0: i32) -> (i32, i32, i32, i32) {
    %c0_i32 = arith.constant 0 : i32
    %c0_i32_0 = arith.constant 0 : i32
    %c0_i32_1 = arith.constant 0 : i32
    %c0_i32_2 = arith.constant 0 : i32
    %c0_i32_3 = arith.constant 0 : i32
    return %c0_i32, %c0_i32_0, %c0_i32_1, %c0_i32_2 : i32, i32, i32, i32
  }
  func.func @transform_7(%arg0: i32) -> (i32, i32, i32, i32) {
    %c0_i32 = arith.constant 0 : i32
    %c0_i32_0 = arith.constant 0 : i32
    %c0_i32_1 = arith.constant 0 : i32
    %c0_i32_2 = arith.constant 0 : i32
    %c0_i32_3 = arith.constant 0 : i32
    return %c0_i32, %c0_i32_0, %c0_i32_1, %c0_i32_2 : i32, i32, i32, i32
  }
  func.func @transform_8(%arg0: i32) -> (i32, i32, i32, i32) {
    %c0_i32 = arith.constant 0 : i32
    %c0_i32_0 = arith.constant 0 : i32
    %c0_i32_1 = arith.constant 0 : i32
    %c0_i32_2 = arith.constant 0 : i32
    %c0_i32_3 = arith.constant 0 : i32
    return %c0_i32, %c0_i32_0, %c0_i32_1, %c0_i32_2 : i32, i32, i32, i32
  }
  func.func @transform_9(%arg0: i32) -> (i32, i32, i32, i32) {
    %c0_i32 = arith.constant 0 : i32
    %c0_i32_0 = arith.constant 0 : i32
    %c0_i32_1 = arith.constant 0 : i32
    %c0_i32_2 = arith.constant 0 : i32
    %c0_i32_3 = arith.constant 0 : i32
    return %c0_i32, %c0_i32_0, %c0_i32_1, %c0_i32_2 : i32, i32, i32, i32
  }
  func.func @transform_10(%arg0: i32) -> (i32, i32, i32, i32) {
    %c0_i32 = arith.constant 0 : i32
    %c0_i32_0 = arith.constant 0 : i32
    %c0_i32_1 = arith.constant 0 : i32
    %c0_i32_2 = arith.constant 0 : i32
    %c0_i32_3 = arith.constant 0 : i32
    return %c0_i32, %c0_i32_0, %c0_i32_1, %c0_i32_2 : i32, i32, i32, i32
  }
  func.func @transform_11(%arg0: i32) -> (i32, i32, i32) {
    %c0_i32 = arith.constant 0 : i32
    %c0_i32_0 = arith.constant 0 : i32
    %c0_i32_1 = arith.constant 0 : i32
    %c0_i32_2 = arith.constant 0 : i32
    return %c0_i32, %c0_i32_0, %c0_i32_1 : i32, i32, i32
  }
  func.func @transform_12(%arg0: i32) -> (i32, i32, i32) {
    %c0_i32 = arith.constant 0 : i32
    %c0_i32_0 = arith.constant 0 : i32
    %c0_i32_1 = arith.constant 0 : i32
    %c0_i32_2 = arith.constant 0 : i32
    return %c0_i32, %c0_i32_0, %c0_i32_1 : i32, i32, i32
  }
  func.func @transform_13(%arg0: i32) -> (i32, i32, i32) {
    %c0_i32 = arith.constant 0 : i32
    %c0_i32_0 = arith.constant 0 : i32
    %c0_i32_1 = arith.constant 0 : i32
    %c0_i32_2 = arith.constant 0 : i32
    return %c0_i32, %c0_i32_0, %c0_i32_1 : i32, i32, i32
  }
  func.func @transform_14(%arg0: i32) -> (i32, i32, i32) {
    %c0_i32 = arith.constant 0 : i32
    %c0_i32_0 = arith.constant 0 : i32
    %c0_i32_1 = arith.constant 0 : i32
    %c0_i32_2 = arith.constant 0 : i32
    return %c0_i32, %c0_i32_0, %c0_i32_1 : i32, i32, i32
  }
  func.func @transform_15(%arg0: i32) -> (i32, i32, i32) {
    %c0_i32 = arith.constant 0 : i32
    %c0_i32_0 = arith.constant 0 : i32
    %c0_i32_1 = arith.constant 0 : i32
    %c0_i32_2 = arith.constant 0 : i32
    return %c0_i32, %c0_i32_0, %c0_i32_1 : i32, i32, i32
  }
  func.func @transform_16(%arg0: i32) -> (i32, i32, i32) {
    %c0_i32 = arith.constant 0 : i32
    %c0_i32_0 = arith.constant 0 : i32
    %c0_i32_1 = arith.constant 0 : i32
    %c0_i32_2 = arith.constant 0 : i32
    return %c0_i32, %c0_i32_0, %c0_i32_1 : i32, i32, i32
  }
  func.func @transform_17(%arg0: i32) -> (i32, i32, i32) {
    %c0_i32 = arith.constant 0 : i32
    %c0_i32_0 = arith.constant 0 : i32
    %c0_i32_1 = arith.constant 0 : i32
    %c0_i32_2 = arith.constant 0 : i32
    return %c0_i32, %c0_i32_0, %c0_i32_1 : i32, i32, i32
  }
  func.func @transform_18(%arg0: i32) -> (i32, i32, i32) {
    %c0_i32 = arith.constant 0 : i32
    %c0_i32_0 = arith.constant 0 : i32
    %c0_i32_1 = arith.constant 0 : i32
    %c0_i32_2 = arith.constant 0 : i32
    return %c0_i32, %c0_i32_0, %c0_i32_1 : i32, i32, i32
  }
  func.func @transform_19(%arg0: i32) -> (i32, i32, i32) {
    %c0_i32 = arith.constant 0 : i32
    %c0_i32_0 = arith.constant 0 : i32
    %c0_i32_1 = arith.constant 0 : i32
    %c0_i32_2 = arith.constant 0 : i32
    return %c0_i32, %c0_i32_0, %c0_i32_1 : i32, i32, i32
  }
  func.func @transform_20(%arg0: i32) -> (i32, i32, i32) {
    %c0_i32 = arith.constant 0 : i32
    %c0_i32_0 = arith.constant 0 : i32
    %c0_i32_1 = arith.constant 0 : i32
    %c0_i32_2 = arith.constant 0 : i32
    return %c0_i32, %c0_i32_0, %c0_i32_1 : i32, i32, i32
  }
  func.func @transform_21(%arg0: i32) -> (i32, i32) {
    %c0_i32 = arith.constant 0 : i32
    %c0_i32_0 = arith.constant 0 : i32
    %c0_i32_1 = arith.constant 0 : i32
    return %c0_i32, %c0_i32_0 : i32, i32
  }
  func.func @transform_22(%arg0: i32) -> (i32, i32) {
    %c0_i32 = arith.constant 0 : i32
    %c0_i32_0 = arith.constant 0 : i32
    %c0_i32_1 = arith.constant 0 : i32
    return %c0_i32, %c0_i32_0 : i32, i32
  }
  func.func @transform_23(%arg0: i32) -> (i32, i32, i32) {
    %c0_i32 = arith.constant 0 : i32
    %c0_i32_0 = arith.constant 0 : i32
    %c0_i32_1 = arith.constant 0 : i32
    return %arg0, %c0_i32, %c0_i32_0 : i32, i32, i32
  }
}

</mosaic_0001>

<llo_original>
// kernel: _lambda_.1
$region0: #{_lambda_.1}
  #allocation0 [shape = 'u32[]', space=smem, size = 0x4, offset = 0x4, fixed_abs, tag = 'smem constant byte address 0x4 - core index']
  #allocation1 [shape = 'u32[72,128]{1,0:T(1,128)}', space=vmem, size = 0x9000, scoped, tag = 'internal scratch']
  %s0 = inlined_call_operand.vmem [shape: f32[2,8,32], index: 0, kind: input, shape index: {}]
  %s1 = inlined_call_operand.vmem [shape: f32[2,1,8], index: 1, kind: input, shape index: {}]
  %s2 = inlined_call_operand.vmem [shape: s32[2], index: 2, kind: input, shape index: {}]
  %s3 = inlined_call_operand.vmem [shape: f32[1,32], index: 3, kind: input, shape index: {}]
  %s4 = inlined_call_operand.vmem [shape: f32[1,32], index: 4, kind: input, shape index: {}]
  %s5 = inlined_call_operand.vmem [shape: bf16[2,2,32,16], index: 5, kind: input, shape index: {}]
  %s6 = inlined_call_operand.vmem [shape: f32[2,2,1,16], index: 6, kind: input, shape index: {}]
  %s7 = inlined_call_operand.vmem [shape: bf16[2,2,16,32], index: 7, kind: input, shape index: {}]
  %s8 = inlined_call_operand.vmem [shape: f32[2,2,16,1], index: 8, kind: input, shape index: {}]
  %s9 = inlined_call_operand.vmem [shape: bf16[2,2,32,16], index: 9, kind: input, shape index: {}]
  %s10 = inlined_call_operand.vmem [shape: f32[2,2,1,16], index: 10, kind: input, shape index: {}]
  %s11 = inlined_call_operand.vmem [shape: bf16[2,32,32], index: 11, kind: input, shape index: {}]
  %s12 = inlined_call_operand.vmem [shape: f32[2,1,32], index: 12, kind: input, shape index: {}]
  %s13 = inlined_call_operand.vmem [shape: f32[2,1,32], index: 13, kind: input, shape index: {}]
  %s14 = inlined_call_operand.vmem [shape: f32[2,1,32], index: 14, kind: input, shape index: {}]
  %s15 = inlined_call_operand.vmem [shape: bf16[2,32,64], index: 15, kind: input, shape index: {}]
  %s16 = inlined_call_operand.vmem [shape: f32[2,1,64], index: 16, kind: input, shape index: {}]
  %s17 = inlined_call_operand.vmem [shape: bf16[2,64,32], index: 17, kind: input, shape index: {}]
  %s18 = inlined_call_operand.vmem [shape: f32[2,1,32], index: 18, kind: input, shape index: {}]
  %s19 = inlined_call_operand.vmem [shape: f32[2,1,32], index: 19, kind: input, shape index: {}]
  %s20 = inlined_call_operand.vmem [shape: f32[2,1,32], index: 20, kind: input, shape index: {}]
  %s21 = inlined_call_operand.vmem [shape: bf16[32,128], index: 21, kind: input, shape index: {}]
  %s22 = inlined_call_operand.vmem [shape: f32[1,128], index: 22, kind: input, shape index: {}]
  %s23 = inlined_call_operand.vmem [shape: f32[2,1,128], index: 23, kind: output, shape index: {}]
  %s24 = sld [smem:[#allocation0]]
  $region129: #{_lambda_.1} parent=0
    _
  %s26 = ssub.s32 1, %s24
  %s27 = scalar_select 0, %s26, %s24
  $region1: #{_lambda_.1} parent=0
    #allocation2 [shape = 'u8[512]{0}', space=smem, size = 0x200, scoped, tag = 'input window, operand 2, single buffered']
    #allocation3 [shape = 's32[2]{0}', space=sflag, size = 0x8, scoped, tag = 'scoped memory for _lambda_.1']
    %28 = vsyncpa [#allocation3], 0
    loop: start=0, step=1, limit=4
    $region2: #{_lambda_.1} parent=1 // loop_pre_header
      _
    $region3: #{_lambda_.1} parent=1 // loop_header
      %s30 = sphi 0, %s34
      %p31 = scmp.ge.s32.totalorder %s30, 4
      %s40 = sphi 0, %s42
      %s43 = sphi 0, %s40
      %s44 = sphi 0, %s43
      %s60 = sphi 0, %s44
      %s66 = sphi 0, %s68
      %s69 = sphi 0, %s66
      %s70 = sphi 0, %s69
      %s86 = sphi 0, %s70
      %s90 = sphi 0, %s90
      %s92 = sphi 0, %s90
      %s93 = sphi 0, %s92
      %s107 = sphi 0, %s93
      %s111 = sphi 0, %s111
      %s113 = sphi 0, %s111
      %s114 = sphi 0, %s113
      %s128 = sphi 0, %s114
      %s132 = sphi 0, %s132
      %s134 = sphi 0, %s132
      %s135 = sphi 0, %s134
      %s149 = sphi 0, %s135
      %s153 = sphi 0, %s153
      %s155 = sphi 0, %s153
      %s156 = sphi 0, %s155
      %s170 = sphi 0, %s156
      %s174 = sphi 0, %s174
      %s176 = sphi 0, %s174
      %s177 = sphi 0, %s176
      %s191 = sphi 0, %s177
      %s195 = sphi 0, %s195
      %s197 = sphi 0, %s195
      %s198 = sphi 0, %s197
      %s212 = sphi 0, %s198
      %s216 = sphi 0, %s216
      %s218 = sphi 0, %s216
      %s219 = sphi 0, %s218
      %s233 = sphi 0, %s219
      %s237 = sphi 0, %s237
      %s239 = sphi 0, %s237
      %s240 = sphi 0, %s239
      %s254 = sphi 0, %s240
      %s258 = sphi 0, %s258
      %s260 = sphi 0, %s258
      %s261 = sphi 0, %s260
      %s275 = sphi 0, %s261
      %s279 = sphi 0, %s279
      %s281 = sphi 0, %s279
      %s282 = sphi 0, %s281
      %s296 = sphi 0, %s282
      %s300 = sphi 0, %s300
      %s302 = sphi 0, %s300
      %s303 = sphi 0, %s302
      %s317 = sphi 0, %s303
      %s321 = sphi 0, %s321
      %s323 = sphi 0, %s321
      %s324 = sphi 0, %s323
      %s338 = sphi 0, %s324
      %s342 = sphi 0, %s342
      %s344 = sphi 0, %s342
      %s345 = sphi 0, %s344
      %s359 = sphi 0, %s345
      %s363 = sphi 0, %s363
      %s365 = sphi 0, %s363
      %s366 = sphi 0, %s365
      %s380 = sphi 0, %s366
      %s384 = sphi 0, %s384
      %s386 = sphi 0, %s384
      %s387 = sphi 0, %s386
      %s401 = sphi 0, %s387
      %s405 = sphi 0, %s405
      %s407 = sphi 0, %s405
      %s408 = sphi 0, %s407
      %s422 = sphi 0, %s408
      %s426 = sphi 0, %s426
      %s428 = sphi 0, %s426
      %s429 = sphi 0, %s428
      %s443 = sphi 0, %s429
      %s447 = sphi 0, %s447
      %s449 = sphi 0, %s447
      %s450 = sphi 0, %s449
      %s464 = sphi 0, %s450
      %s468 = sphi 0, %s468
      %s470 = sphi 0, %s468
      %s471 = sphi 0, %s470
      %s485 = sphi 0, %s471
      %s489 = sphi 0, %s489
      %s491 = sphi 0, %s489
      %s492 = sphi 0, %s491
      %s506 = sphi 0, %s492
      %s510 = sphi 0, %s510
      %s512 = sphi 0, %s510
      %s513 = sphi 0, %s512
      %s527 = sphi 0, %s513
      %s533 = sphi 0, %s535
      %s536 = sphi 0, %s533
      %s537 = sphi 0, %s536
      %s553 = sphi 0, %s537
    $region4: #{_lambda_.1} parent=1 // loop_header_branch
      %33 = sbr.rel (%p31) target = $region8
    $region5: #{_lambda_.1} parent=1 // loop_body
      %s35 = ssub.s32 %s30, 1
      %s36 = ssub.s32 %s30, 2
      %s37 = sadd.s32 %s30, 1
      %s38 = ssub.s32 %s30, %s37
      %p39 = scmp.eq.s32.totalorder %s38, 0
      %s41 = sadd.s32 %s40, 1
      %s42 = scalar_select %p39, %s40, %s41
      %p45 = pneg %p39
      %p46 = scmp.eq.s32.totalorder %s30, 1
      %p47 = por %p45, %p46
      %p48 = scmp.ne.s32.totalorder %s40, %s43
      %p49 = scmp.eq.s32.totalorder %s30, 0
      %p50 = por %p48, %p49
      %p51 = scmp.ne.s32.totalorder %s40, %s43
      %p52 = scmp.eq.s32.totalorder %s35, 1
      %p53 = por %p51, %p52
      %p54 = scmp.ne.s32.totalorder %s43, %s44
      %p55 = scmp.eq.s32.totalorder %s35, 0
      %p56 = por %p54, %p55
      %p57 = scmp.ne.s32.totalorder %s43, %s44
      %p58 = scmp.eq.s32.totalorder %s36, 1
      %p59 = por %p57, %p58
      %p61 = scmp.ne.s32.totalorder %s44, %s60
      %p62 = scmp.eq.s32.totalorder %s36, 0
      %p63 = por %p61, %p62
      %s64 = ssub.s32 %s30, %s37
      %p65 = scmp.eq.s32.totalorder %s64, 0
      %s67 = sadd.s32 %s66, 1
      %s68 = scalar_select %p65, %s66, %s67
      %p71 = pneg %p65
      %p72 = scmp.eq.s32.totalorder %s30, 1
      %p73 = por %p71, %p72
      %p74 = scmp.ne.s32.totalorder %s66, %s69
      %p75 = scmp.eq.s32.totalorder %s30, 0
      %p76 = por %p74, %p75
      %p77 = scmp.ne.s32.totalorder %s66, %s69
      %p78 = scmp.eq.s32.totalorder %s35, 1
      %p79 = por %p77, %p78
      %p80 = scmp.ne.s32.totalorder %s69, %s70
      %p81 = scmp.eq.s32.totalorder %s35, 0
      %p82 = por %p80, %p81
      %p83 = scmp.ne.s32.totalorder %s69, %s70
      %p84 = scmp.eq.s32.totalorder %s36, 1
      %p85 = por %p83, %p84
      %p87 = scmp.ne.s32.totalorder %s70, %s86
      %p88 = scmp.eq.s32.totalorder %s36, 0
      %p89 = por %p87, %p88
      %s91 = sadd.s32 %s90, 1
      %p94 = scmp.eq.s32.totalorder %s30, 1
      %p95 = scmp.ne.s32.totalorder %s90, %s92
      %p96 = scmp.eq.s32.totalorder %s30, 0
      %p97 = por %p95, %p96
      %p98 = scmp.ne.s32.totalorder %s90, %s92
      %p99 = scmp.eq.s32.totalorder %s35, 1
      %p100 = por %p98, %p99
      %p101 = scmp.ne.s32.totalorder %s92, %s93
      %p102 = scmp.eq.s32.totalorder %s35, 0
      %p103 = por %p101, %p102
      %p104 = scmp.ne.s32.totalorder %s92, %s93
      %p105 = scmp.eq.s32.totalorder %s36, 1
      %p106 = por %p104, %p105
      %p108 = scmp.ne.s32.totalorder %s93, %s107
      %p109 = scmp.eq.s32.totalorder %s36, 0
      %p110 = por %p108, %p109
      %s112 = sadd.s32 %s111, 1
      %p115 = scmp.eq.s32.totalorder %s30, 1
      %p116 = scmp.ne.s32.totalorder %s111, %s113
      %p117 = scmp.eq.s32.totalorder %s30, 0
      %p118 = por %p116, %p117
      %p119 = scmp.ne.s32.totalorder %s111, %s113
      %p120 = scmp.eq.s32.totalorder %s35, 1
      %p121 = por %p119, %p120
      %p122 = scmp.ne.s32.totalorder %s113, %s114
      %p123 = scmp.eq.s32.totalorder %s35, 0
      %p124 = por %p122, %p123
      %p125 = scmp.ne.s32.totalorder %s113, %s114
      %p126 = scmp.eq.s32.totalorder %s36, 1
      %p127 = por %p125, %p126
      %p129 = scmp.ne.s32.totalorder %s114, %s128
      %p130 = scmp.eq.s32.totalorder %s36, 0
      %p131 = por %p129, %p130
      %s133 = sadd.s32 %s132, 1
      %p136 = scmp.eq.s32.totalorder %s30, 1
      %p137 = scmp.ne.s32.totalorder %s132, %s134
      %p138 = scmp.eq.s32.totalorder %s30, 0
      %p139 = por %p137, %p138
      %p140 = scmp.ne.s32.totalorder %s132, %s134
      %p141 = scmp.eq.s32.totalorder %s35, 1
      %p142 = por %p140, %p141
      %p143 = scmp.ne.s32.totalorder %s134, %s135
      %p144 = scmp.eq.s32.totalorder %s35, 0
      %p145 = por %p143, %p144
      %p146 = scmp.ne.s32.totalorder %s134, %s135
      %p147 = scmp.eq.s32.totalorder %s36, 1
      %p148 = por %p146, %p147
      %p150 = scmp.ne.s32.totalorder %s135, %s149
      %p151 = scmp.eq.s32.totalorder %s36, 0
      %p152 = por %p150, %p151
      %s154 = sadd.s32 %s153, 1
      %p157 = scmp.eq.s32.totalorder %s30, 1
      %p158 = scmp.ne.s32.totalorder %s153, %s155
      %p159 = scmp.eq.s32.totalorder %s30, 0
      %p160 = por %p158, %p159
      %p161 = scmp.ne.s32.totalorder %s153, %s155
      %p162 = scmp.eq.s32.totalorder %s35, 1
      %p163 = por %p161, %p162
      %p164 = scmp.ne.s32.totalorder %s155, %s156
      %p165 = scmp.eq.s32.totalorder %s35, 0
      %p166 = por %p164, %p165
      %p167 = scmp.ne.s32.totalorder %s155, %s156
      %p168 = scmp.eq.s32.totalorder %s36, 1
      %p169 = por %p167, %p168
      %p171 = scmp.ne.s32.totalorder %s156, %s170
      %p172 = scmp.eq.s32.totalorder %s36, 0
      %p173 = por %p171, %p172
      %s175 = sadd.s32 %s174, 1
      %p178 = scmp.eq.s32.totalorder %s30, 1
      %p179 = scmp.ne.s32.totalorder %s174, %s176
      %p180 = scmp.eq.s32.totalorder %s30, 0
      %p181 = por %p179, %p180
      %p182 = scmp.ne.s32.totalorder %s174, %s176
      %p183 = scmp.eq.s32.totalorder %s35, 1
      %p184 = por %p182, %p183
      %p185 = scmp.ne.s32.totalorder %s176, %s177
      %p186 = scmp.eq.s32.totalorder %s35, 0
      %p187 = por %p185, %p186
      %p188 = scmp.ne.s32.totalorder %s176, %s177
      %p189 = scmp.eq.s32.totalorder %s36, 1
      %p190 = por %p188, %p189
      %p192 = scmp.ne.s32.totalorder %s177, %s191
      %p193 = scmp.eq.s32.totalorder %s36, 0
      %p194 = por %p192, %p193
      %s196 = sadd.s32 %s195, 1
      %p199 = scmp.eq.s32.totalorder %s30, 1
      %p200 = scmp.ne.s32.totalorder %s195, %s197
      %p201 = scmp.eq.s32.totalorder %s30, 0
      %p202 = por %p200, %p201
      %p203 = scmp.ne.s32.totalorder %s195, %s197
      %p204 = scmp.eq.s32.totalorder %s35, 1
      %p205 = por %p203, %p204
      %p206 = scmp.ne.s32.totalorder %s197, %s198
      %p207 = scmp.eq.s32.totalorder %s35, 0
      %p208 = por %p206, %p207
      %p209 = scmp.ne.s32.totalorder %s197, %s198
      %p210 = scmp.eq.s32.totalorder %s36, 1
      %p211 = por %p209, %p210
      %p213 = scmp.ne.s32.totalorder %s198, %s212
      %p214 = scmp.eq.s32.totalorder %s36, 0
      %p215 = por %p213, %p214
      %s217 = sadd.s32 %s216, 1
      %p220 = scmp.eq.s32.totalorder %s30, 1
      %p221 = scmp.ne.s32.totalorder %s216, %s218
      %p222 = scmp.eq.s32.totalorder %s30, 0
      %p223 = por %p221, %p222
      %p224 = scmp.ne.s32.totalorder %s216, %s218
      %p225 = scmp.eq.s32.totalorder %s35, 1
      %p226 = por %p224, %p225
      %p227 = scmp.ne.s32.totalorder %s218, %s219
      %p228 = scmp.eq.s32.totalorder %s35, 0
      %p229 = por %p227, %p228
      %p230 = scmp.ne.s32.totalorder %s218, %s219
      %p231 = scmp.eq.s32.totalorder %s36, 1
      %p232 = por %p230, %p231
      %p234 = scmp.ne.s32.totalorder %s219, %s233
      %p235 = scmp.eq.s32.totalorder %s36, 0
      %p236 = por %p234, %p235
      %s238 = sadd.s32 %s237, 1
      %p241 = scmp.eq.s32.totalorder %s30, 1
      %p242 = scmp.ne.s32.totalorder %s237, %s239
      %p243 = scmp.eq.s32.totalorder %s30, 0
      %p244 = por %p242, %p243
      %p245 = scmp.ne.s32.totalorder %s237, %s239
      %p246 = scmp.eq.s32.totalorder %s35, 1
      %p247 = por %p245, %p246
      %p248 = scmp.ne.s32.totalorder %s239, %s240
      %p249 = scmp.eq.s32.totalorder %s35, 0
      %p250 = por %p248, %p249
      %p251 = scmp.ne.s32.totalorder %s239, %s240
      %p252 = scmp.eq.s32.totalorder %s36, 1
      %p253 = por %p251, %p252
      %p255 = scmp.ne.s32.totalorder %s240, %s254
      %p256 = scmp.eq.s32.totalorder %s36, 0
      %p257 = por %p255, %p256
      %s259 = sadd.s32 %s258, 1
      %p262 = scmp.eq.s32.totalorder %s30, 1
      %p263 = scmp.ne.s32.totalorder %s258, %s260
      %p264 = scmp.eq.s32.totalorder %s30, 0
      %p265 = por %p263, %p264
      %p266 = scmp.ne.s32.totalorder %s258, %s260
      %p267 = scmp.eq.s32.totalorder %s35, 1
      %p268 = por %p266, %p267
      %p269 = scmp.ne.s32.totalorder %s260, %s261
      %p270 = scmp.eq.s32.totalorder %s35, 0
      %p271 = por %p269, %p270
      %p272 = scmp.ne.s32.totalorder %s260, %s261
      %p273 = scmp.eq.s32.totalorder %s36, 1
      %p274 = por %p272, %p273
      %p276 = scmp.ne.s32.totalorder %s261, %s275
      %p277 = scmp.eq.s32.totalorder %s36, 0
      %p278 = por %p276, %p277
      %s280 = sadd.s32 %s279, 1
      %p283 = scmp.eq.s32.totalorder %s30, 1
      %p284 = scmp.ne.s32.totalorder %s279, %s281
      %p285 = scmp.eq.s32.totalorder %s30, 0
      %p286 = por %p284, %p285
      %p287 = scmp.ne.s32.totalorder %s279, %s281
      %p288 = scmp.eq.s32.totalorder %s35, 1
      %p289 = por %p287, %p288
      %p290 = scmp.ne.s32.totalorder %s281, %s282
      %p291 = scmp.eq.s32.totalorder %s35, 0
      %p292 = por %p290, %p291
      %p293 = scmp.ne.s32.totalorder %s281, %s282
      %p294 = scmp.eq.s32.totalorder %s36, 1
      %p295 = por %p293, %p294
      %p297 = scmp.ne.s32.totalorder %s282, %s296
      %p298 = scmp.eq.s32.totalorder %s36, 0
      %p299 = por %p297, %p298
      %s301 = sadd.s32 %s300, 1
      %p304 = scmp.eq.s32.totalorder %s30, 1
      %p305 = scmp.ne.s32.totalorder %s300, %s302
      %p306 = scmp.eq.s32.totalorder %s30, 0
      %p307 = por %p305, %p306
      %p308 = scmp.ne.s32.totalorder %s300, %s302
      %p309 = scmp.eq.s32.totalorder %s35, 1
      %p310 = por %p308, %p309
      %p311 = scmp.ne.s32.totalorder %s302, %s303
      %p312 = scmp.eq.s32.totalorder %s35, 0
      %p313 = por %p311, %p312
      %p314 = scmp.ne.s32.totalorder %s302, %s303
      %p315 = scmp.eq.s32.totalorder %s36, 1
      %p316 = por %p314, %p315
      %p318 = scmp.ne.s32.totalorder %s303, %s317
      %p319 = scmp.eq.s32.totalorder %s36, 0
      %p320 = por %p318, %p319
      %s322 = sadd.s32 %s321, 1
      %p325 = scmp.eq.s32.totalorder %s30, 1
      %p326 = scmp.ne.s32.totalorder %s321, %s323
      %p327 = scmp.eq.s32.totalorder %s30, 0
      %p328 = por %p326, %p327
      %p329 = scmp.ne.s32.totalorder %s321, %s323
      %p330 = scmp.eq.s32.totalorder %s35, 1
      %p331 = por %p329, %p330
      %p332 = scmp.ne.s32.totalorder %s323, %s324
      %p333 = scmp.eq.s32.totalorder %s35, 0
      %p334 = por %p332, %p333
      %p335 = scmp.ne.s32.totalorder %s323, %s324
      %p336 = scmp.eq.s32.totalorder %s36, 1
      %p337 = por %p335, %p336
      %p339 = scmp.ne.s32.totalorder %s324, %s338
      %p340 = scmp.eq.s32.totalorder %s36, 0
      %p341 = por %p339, %p340
      %s343 = sadd.s32 %s342, 1
      %p346 = scmp.eq.s32.totalorder %s30, 1
      %p347 = scmp.ne.s32.totalorder %s342, %s344
      %p348 = scmp.eq.s32.totalorder %s30, 0
      %p349 = por %p347, %p348
      %p350 = scmp.ne.s32.totalorder %s342, %s344
      %p351 = scmp.eq.s32.totalorder %s35, 1
      %p352 = por %p350, %p351
      %p353 = scmp.ne.s32.totalorder %s344, %s345
      %p354 = scmp.eq.s32.totalorder %s35, 0
      %p355 = por %p353, %p354
      %p356 = scmp.ne.s32.totalorder %s344, %s345
      %p357 = scmp.eq.s32.totalorder %s36, 1
      %p358 = por %p356, %p357
      %p360 = scmp.ne.s32.totalorder %s345, %s359
      %p361 = scmp.eq.s32.totalorder %s36, 0
      %p362 = por %p360, %p361
      %s364 = sadd.s32 %s363, 1
      %p367 = scmp.eq.s32.totalorder %s30, 1
      %p368 = scmp.ne.s32.totalorder %s363, %s365
      %p369 = scmp.eq.s32.totalorder %s30, 0
      %p370 = por %p368, %p369
      %p371 = scmp.ne.s32.totalorder %s363, %s365
      %p372 = scmp.eq.s32.totalorder %s35, 1
      %p373 = por %p371, %p372
      %p374 = scmp.ne.s32.totalorder %s365, %s366
      %p375 = scmp.eq.s32.totalorder %s35, 0
      %p376 = por %p374, %p375
      %p377 = scmp.ne.s32.totalorder %s365, %s366
      %p378 = scmp.eq.s32.totalorder %s36, 1
      %p379 = por %p377, %p378
      %p381 = scmp.ne.s32.totalorder %s366, %s380
      %p382 = scmp.eq.s32.totalorder %s36, 0
      %p383 = por %p381, %p382
      %s385 = sadd.s32 %s384, 1
      %p388 = scmp.eq.s32.totalorder %s30, 1
      %p389 = scmp.ne.s32.totalorder %s384, %s386
      %p390 = scmp.eq.s32.totalorder %s30, 0
      %p391 = por %p389, %p390
      %p392 = scmp.ne.s32.totalorder %s384, %s386
      %p393 = scmp.eq.s32.totalorder %s35, 1
      %p394 = por %p392, %p393
      %p395 = scmp.ne.s32.totalorder %s386, %s387
      %p396 = scmp.eq.s32.totalorder %s35, 0
      %p397 = por %p395, %p396
      %p398 = scmp.ne.s32.totalorder %s386, %s387
      %p399 = scmp.eq.s32.totalorder %s36, 1
      %p400 = por %p398, %p399
      %p402 = scmp.ne.s32.totalorder %s387, %s401
      %p403 = scmp.eq.s32.totalorder %s36, 0
      %p404 = por %p402, %p403
      %s406 = sadd.s32 %s405, 1
      %p409 = scmp.eq.s32.totalorder %s30, 1
      %p410 = scmp.ne.s32.totalorder %s405, %s407
      %p411 = scmp.eq.s32.totalorder %s30, 0
      %p412 = por %p410, %p411
      %p413 = scmp.ne.s32.totalorder %s405, %s407
      %p414 = scmp.eq.s32.totalorder %s35, 1
      %p415 = por %p413, %p414
      %p416 = scmp.ne.s32.totalorder %s407, %s408
      %p417 = scmp.eq.s32.totalorder %s35, 0
      %p418 = por %p416, %p417
      %p419 = scmp.ne.s32.totalorder %s407, %s408
      %p420 = scmp.eq.s32.totalorder %s36, 1
      %p421 = por %p419, %p420
      %p423 = scmp.ne.s32.totalorder %s408, %s422
      %p424 = scmp.eq.s32.totalorder %s36, 0
      %p425 = por %p423, %p424
      %s427 = sadd.s32 %s426, 1
      %p430 = scmp.eq.s32.totalorder %s30, 1
      %p431 = scmp.ne.s32.totalorder %s426, %s428
      %p432 = scmp.eq.s32.totalorder %s30, 0
      %p433 = por %p431, %p432
      %p434 = scmp.ne.s32.totalorder %s426, %s428
      %p435 = scmp.eq.s32.totalorder %s35, 1
      %p436 = por %p434, %p435
      %p437 = scmp.ne.s32.totalorder %s428, %s429
      %p438 = scmp.eq.s32.totalorder %s35, 0
      %p439 = por %p437, %p438
      %p440 = scmp.ne.s32.totalorder %s428, %s429
      %p441 = scmp.eq.s32.totalorder %s36, 1
      %p442 = por %p440, %p441
      %p444 = scmp.ne.s32.totalorder %s429, %s443
      %p445 = scmp.eq.s32.totalorder %s36, 0
      %p446 = por %p444, %p445
      %s448 = sadd.s32 %s447, 1
      %p451 = scmp.eq.s32.totalorder %s30, 1
      %p452 = scmp.ne.s32.totalorder %s447, %s449
      %p453 = scmp.eq.s32.totalorder %s30, 0
      %p454 = por %p452, %p453
      %p455 = scmp.ne.s32.totalorder %s447, %s449
      %p456 = scmp.eq.s32.totalorder %s35, 1
      %p457 = por %p455, %p456
      %p458 = scmp.ne.s32.totalorder %s449, %s450
      %p459 = scmp.eq.s32.totalorder %s35, 0
      %p460 = por %p458, %p459
      %p461 = scmp.ne.s32.totalorder %s449, %s450
      %p462 = scmp.eq.s32.totalorder %s36, 1
      %p463 = por %p461, %p462
      %p465 = scmp.ne.s32.totalorder %s450, %s464
      %p466 = scmp.eq.s32.totalorder %s36, 0
      %p467 = por %p465, %p466
      %s469 = sadd.s32 %s468, 1
      %p472 = scmp.eq.s32.totalorder %s30, 1
      %p473 = scmp.ne.s32.totalorder %s468, %s470
      %p474 = scmp.eq.s32.totalorder %s30, 0
      %p475 = por %p473, %p474
      %p476 = scmp.ne.s32.totalorder %s468, %s470
      %p477 = scmp.eq.s32.totalorder %s35, 1
      %p478 = por %p476, %p477
      %p479 = scmp.ne.s32.totalorder %s470, %s471
      %p480 = scmp.eq.s32.totalorder %s35, 0
      %p481 = por %p479, %p480
      %p482 = scmp.ne.s32.totalorder %s470, %s471
      %p483 = scmp.eq.s32.totalorder %s36, 1
      %p484 = por %p482, %p483
      %p486 = scmp.ne.s32.totalorder %s471, %s485
      %p487 = scmp.eq.s32.totalorder %s36, 0
      %p488 = por %p486, %p487
      %s490 = sadd.s32 %s489, 1
      %p493 = scmp.eq.s32.totalorder %s30, 1
      %p494 = scmp.ne.s32.totalorder %s489, %s491
      %p495 = scmp.eq.s32.totalorder %s30, 0
      %p496 = por %p494, %p495
      %p497 = scmp.ne.s32.totalorder %s489, %s491
      %p498 = scmp.eq.s32.totalorder %s35, 1
      %p499 = por %p497, %p498
      %p500 = scmp.ne.s32.totalorder %s491, %s492
      %p501 = scmp.eq.s32.totalorder %s35, 0
      %p502 = por %p500, %p501
      %p503 = scmp.ne.s32.totalorder %s491, %s492
      %p504 = scmp.eq.s32.totalorder %s36, 1
      %p505 = por %p503, %p504
      %p507 = scmp.ne.s32.totalorder %s492, %s506
      %p508 = scmp.eq.s32.totalorder %s36, 0
      %p509 = por %p507, %p508
      %s511 = sadd.s32 %s510, 1
      %p514 = scmp.eq.s32.totalorder %s30, 1
      %p515 = scmp.ne.s32.totalorder %s510, %s512
      %p516 = scmp.eq.s32.totalorder %s30, 0
      %p517 = por %p515, %p516
      %p518 = scmp.ne.s32.totalorder %s510, %s512
      %p519 = scmp.eq.s32.totalorder %s35, 1
      %p520 = por %p518, %p519
      %p521 = scmp.ne.s32.totalorder %s512, %s513
      %p522 = scmp.eq.s32.totalorder %s35, 0
      %p523 = por %p521, %p522
      %p524 = scmp.ne.s32.totalorder %s512, %s513
      %p525 = scmp.eq.s32.totalorder %s36, 1
      %p526 = por %p524, %p525
      %p528 = scmp.ne.s32.totalorder %s513, %s527
      %p529 = scmp.eq.s32.totalorder %s36, 0
      %p530 = por %p528, %p529
      %s531 = ssub.s32 %s30, %s37
      %p532 = scmp.eq.s32.totalorder %s531, 0
      %s534 = sadd.s32 %s533, 1
      %s535 = scalar_select %p532, %s533, %s534
      %p538 = pneg %p532
      %p539 = scmp.eq.s32.totalorder %s30, 1
      %p540 = por %p538, %p539
      %p541 = scmp.ne.s32.totalorder %s533, %s536
      %p542 = scmp.eq.s32.totalorder %s30, 0
      %p543 = por %p541, %p542
      %p544 = scmp.ne.s32.totalorder %s533, %s536
      %p545 = scmp.eq.s32.totalorder %s35, 1
      %p546 = por %p544, %p545
      %p547 = scmp.ne.s32.totalorder %s536, %s537
      %p548 = scmp.eq.s32.totalorder %s35, 0
      %p549 = por %p547, %p548
      %p550 = scmp.ne.s32.totalorder %s536, %s537
      %p551 = scmp.eq.s32.totalorder %s36, 1
      %p552 = por %p550, %p551
      %p554 = scmp.ne.s32.totalorder %s537, %s553
      %p555 = scmp.eq.s32.totalorder %s36, 0
      %p556 = por %p554, %p555
      %p557 = scmp.le.s32.totalorder 1, %s30
      %p558 = scmp.lt.s32.totalorder %s30, 3
      %p559 = pnand %p557, %p558
      %p560 = pneg %p559
      // Predicated region
      $region9: #{_lambda_.1} parent=5 // pred_check
        _
      $region10: #{_lambda_.1} parent=5 // pred_check_branch
        %562 = sbr.rel (%p559) target = $region12
      $region11: #{_lambda_.1} parent=5 // pred_region
        %s563 = ssub.s32 %s30, 1
        // Predicated region
        $region13: #{_lambda_.1} parent=11 // pred_check
          %p564 = pneg %p103
        $region14: #{_lambda_.1} parent=11 // pred_check_branch
          %566 = sbr.rel (%p564) target = $region16
        $region15: #{_lambda_.1} parent=11 // pred_region
          %568 = vsyncadd [#allocation3], 0
          %s570 = sshll.u32 %s2, 4
          %s571 = int_to_ptr.vmem [resolvable:$true] %s570
          %573 = dma.vmem_to_smem %s571, 16, [#allocation2], [#allocation3]
        $region16: #{_lambda_.1} parent=11 // pred_fallthru
          _
        // Predicated region
        $region17: #{_lambda_.1} parent=11 // pred_check
          %p574 = pneg %p124
        $region18: #{_lambda_.1} parent=11 // pred_check_branch
          %576 = sbr.rel (%p574) target = $region20
        $region19: #{_lambda_.1} parent=11 // pred_region
          _
        $region20: #{_lambda_.1} parent=11 // pred_fallthru
          _
        // Predicated region
        $region21: #{_lambda_.1} parent=11 // pred_check
          %p577 = pneg %p145
        $region22: #{_lambda_.1} parent=11 // pred_check_branch
          %579 = sbr.rel (%p577) target = $region24
        $region23: #{_lambda_.1} parent=11 // pred_region
          _
        $region24: #{_lambda_.1} parent=11 // pred_fallthru
          _
        // Predicated region
        $region25: #{_lambda_.1} parent=11 // pred_check
          %p580 = pneg %p166
        $region26: #{_lambda_.1} parent=11 // pred_check_branch
          %582 = sbr.rel (%p580) target = $region28
        $region27: #{_lambda_.1} parent=11 // pred_region
          _
        $region28: #{_lambda_.1} parent=11 // pred_fallthru
          _
        // Predicated region
        $region29: #{_lambda_.1} parent=11 // pred_check
          %p583 = pneg %p187
        $region30: #{_lambda_.1} parent=11 // pred_check_branch
          %585 = sbr.rel (%p583) target = $region32
        $region31: #{_lambda_.1} parent=11 // pred_region
          _
        $region32: #{_lambda_.1} parent=11 // pred_fallthru
          _
        // Predicated region
        $region33: #{_lambda_.1} parent=11 // pred_check
          %p586 = pneg %p208
        $region34: #{_lambda_.1} parent=11 // pred_check_branch
          %588 = sbr.rel (%p586) target = $region36
        $region35: #{_lambda_.1} parent=11 // pred_region
          _
        $region36: #{_lambda_.1} parent=11 // pred_fallthru
          _
        // Predicated region
        $region37: #{_lambda_.1} parent=11 // pred_check
          %p589 = pneg %p229
        $region38: #{_lambda_.1} parent=11 // pred_check_branch
          %591 = sbr.rel (%p589) target = $region40
        $region39: #{_lambda_.1} parent=11 // pred_region
          _
        $region40: #{_lambda_.1} parent=11 // pred_fallthru
          _
        // Predicated region
        $region41: #{_lambda_.1} parent=11 // pred_check
          %p592 = pneg %p250
        $region42: #{_lambda_.1} parent=11 // pred_check_branch
          %594 = sbr.rel (%p592) target = $region44
        $region43: #{_lambda_.1} parent=11 // pred_region
          _
        $region44: #{_lambda_.1} parent=11 // pred_fallthru
          _
        // Predicated region
        $region45: #{_lambda_.1} parent=11 // pred_check
          %p595 = pneg %p271
        $region46: #{_lambda_.1} parent=11 // pred_check_branch
          %597 = sbr.rel (%p595) target = $region48
        $region47: #{_lambda_.1} parent=11 // pred_region
          _
        $region48: #{_lambda_.1} parent=11 // pred_fallthru
          _
        // Predicated region
        $region49: #{_lambda_.1} parent=11 // pred_check
          %p598 = pneg %p292
        $region50: #{_lambda_.1} parent=11 // pred_check_branch
          %600 = sbr.rel (%p598) target = $region52
        $region51: #{_lambda_.1} parent=11 // pred_region
          _
        $region52: #{_lambda_.1} parent=11 // pred_fallthru
          _
        // Predicated region
        $region53: #{_lambda_.1} parent=11 // pred_check
          %p601 = pneg %p313
        $region54: #{_lambda_.1} parent=11 // pred_check_branch
          %603 = sbr.rel (%p601) target = $region56
        $region55: #{_lambda_.1} parent=11 // pred_region
          _
        $region56: #{_lambda_.1} parent=11 // pred_fallthru
          _
        // Predicated region
        $region57: #{_lambda_.1} parent=11 // pred_check
          %p604 = pneg %p334
        $region58: #{_lambda_.1} parent=11 // pred_check_branch
          %606 = sbr.rel (%p604) target = $region60
        $region59: #{_lambda_.1} parent=11 // pred_region
          _
        $region60: #{_lambda_.1} parent=11 // pred_fallthru
          _
        // Predicated region
        $region61: #{_lambda_.1} parent=11 // pred_check
          %p607 = pneg %p355
        $region62: #{_lambda_.1} parent=11 // pred_check_branch
          %609 = sbr.rel (%p607) target = $region64
        $region63: #{_lambda_.1} parent=11 // pred_region
          _
        $region64: #{_lambda_.1} parent=11 // pred_fallthru
          _
        // Predicated region
        $region65: #{_lambda_.1} parent=11 // pred_check
          %p610 = pneg %p376
        $region66: #{_lambda_.1} parent=11 // pred_check_branch
          %612 = sbr.rel (%p610) target = $region68
        $region67: #{_lambda_.1} parent=11 // pred_region
          _
        $region68: #{_lambda_.1} parent=11 // pred_fallthru
          _
        // Predicated region
        $region69: #{_lambda_.1} parent=11 // pred_check
          %p613 = pneg %p397
        $region70: #{_lambda_.1} parent=11 // pred_check_branch
          %615 = sbr.rel (%p613) target = $region72
        $region71: #{_lambda_.1} parent=11 // pred_region
          _
        $region72: #{_lambda_.1} parent=11 // pred_fallthru
          _
        // Predicated region
        $region73: #{_lambda_.1} parent=11 // pred_check
          %p616 = pneg %p418
        $region74: #{_lambda_.1} parent=11 // pred_check_branch
          %618 = sbr.rel (%p616) target = $region76
        $region75: #{_lambda_.1} parent=11 // pred_region
          _
        $region76: #{_lambda_.1} parent=11 // pred_fallthru
          _
        // Predicated region
        $region77: #{_lambda_.1} parent=11 // pred_check
          %p619 = pneg %p439
        $region78: #{_lambda_.1} parent=11 // pred_check_branch
          %621 = sbr.rel (%p619) target = $region80
        $region79: #{_lambda_.1} parent=11 // pred_region
          _
        $region80: #{_lambda_.1} parent=11 // pred_fallthru
          _
        // Predicated region
        $region81: #{_lambda_.1} parent=11 // pred_check
          %p622 = pneg %p460
        $region82: #{_lambda_.1} parent=11 // pred_check_branch
          %624 = sbr.rel (%p622) target = $region84
        $region83: #{_lambda_.1} parent=11 // pred_region
          _
        $region84: #{_lambda_.1} parent=11 // pred_fallthru
          _
        // Predicated region
        $region85: #{_lambda_.1} parent=11 // pred_check
          %p625 = pneg %p481
        $region86: #{_lambda_.1} parent=11 // pred_check_branch
          %627 = sbr.rel (%p625) target = $region88
        $region87: #{_lambda_.1} parent=11 // pred_region
          _
        $region88: #{_lambda_.1} parent=11 // pred_fallthru
          _
        // Predicated region
        $region89: #{_lambda_.1} parent=11 // pred_check
          %p628 = pneg %p502
        $region90: #{_lambda_.1} parent=11 // pred_check_branch
          %630 = sbr.rel (%p628) target = $region92
        $region91: #{_lambda_.1} parent=11 // pred_region
          _
        $region92: #{_lambda_.1} parent=11 // pred_fallthru
          _
        // Predicated region
        $region93: #{_lambda_.1} parent=11 // pred_check
          %p631 = pneg %p523
        $region94: #{_lambda_.1} parent=11 // pred_check_branch
          %633 = sbr.rel (%p631) target = $region96
        $region95: #{_lambda_.1} parent=11 // pred_region
          _
        $region96: #{_lambda_.1} parent=11 // pred_fallthru
          _
      $region12: #{_lambda_.1} parent=5 // pred_fallthru
        _
      %p634 = scmp.lt.s32.totalorder %s30, 2
      // Predicated region
      $region97: #{_lambda_.1} parent=5 // pred_check
        %p635 = pneg %p634
      $region98: #{_lambda_.1} parent=5 // pred_check_branch
        %637 = sbr.rel (%p635) target = $region100
      $region99: #{_lambda_.1} parent=5 // pred_region
        // Predicated region
        $region101: #{_lambda_.1} parent=99 // pred_check
          %p638 = pneg %p50
        $region102: #{_lambda_.1} parent=99 // pred_check_branch
          %640 = sbr.rel (%p638) target = $region104
        $region103: #{_lambda_.1} parent=99 // pred_region
          %p641 = scmp.lt.s32.totalorder %s30, 1
          %s642 = scalar_select %p641, %s30, 1
          %s643 = smul.addr %s642, 8
          %s644 = scalar_lea.vmem %s0, %s643
        $region104: #{_lambda_.1} parent=99 // pred_fallthru
          _
        // Predicated region
        $region105: #{_lambda_.1} parent=99 // pred_check
          %p645 = pneg %p76
        $region106: #{_lambda_.1} parent=99 // pred_check_branch
          %647 = sbr.rel (%p645) target = $region108
        $region107: #{_lambda_.1} parent=99 // pred_region
          %p648 = scmp.lt.s32.totalorder %s30, 1
          %s649 = scalar_select %p648, %s30, 1
          %s650 = scalar_lea.vmem %s1, %s649
        $region108: #{_lambda_.1} parent=99 // pred_fallthru
          _
      $region100: #{_lambda_.1} parent=5 // pred_fallthru
        _
      %p651 = scmp.le.s32.totalorder 1, %s30
      %p652 = scmp.lt.s32.totalorder %s30, 3
      %p653 = pnand %p651, %p652
      %p654 = pneg %p653
      // Predicated region
      $region109: #{_lambda_.1} parent=5 // pred_check
        _
      $region110: #{_lambda_.1} parent=5 // pred_check_branch
        %656 = sbr.rel (%p653) target = $region112
      $region111: #{_lambda_.1} parent=5 // pred_region
        %s657 = ssub.s32 %s30, 1
        // Predicated region
        $region113: #{_lambda_.1} parent=111 // pred_check
          %p658 = pneg %p103
        $region114: #{_lambda_.1} parent=111 // pred_check_branch
          %660 = sbr.rel (%p658) target = $region116
        $region115: #{_lambda_.1} parent=111 // pred_region
          %662 = dma.done [#allocation3], 16
        $region116: #{_lambda_.1} parent=111 // pred_fallthru
          _
        %663 = sfence
        %p664 = scmp.lt.s32.totalorder %s35, 1
        %s665 = scalar_select %p664, %s35, 1
        %s666 = smul.addr %s665, 8
        %s667 = scalar_lea.vmem %s0, %s666
        %p668 = pneg %p56
        %p669 = pneg %p53
        %p670 = scmp.lt.s32.totalorder %s35, 1
        %s671 = scalar_select %p670, %s35, 1
        %s672 = scalar_lea.vmem %s1, %s671
        %p673 = pneg %p82
        %p674 = pneg %p79
        %p675 = pneg %p103
        %p676 = pneg %p100
        %p677 = pneg %p124
        %p678 = pneg %p121
        %p679 = pneg %p145
        %p680 = pneg %p142
        %p681 = pneg %p166
        %p682 = pneg %p163
        %p683 = pneg %p187
        %p684 = pneg %p184
        %p685 = pneg %p208
        %p686 = pneg %p205
        %p687 = pneg %p229
        %p688 = pneg %p226
        %p689 = pneg %p250
        %p690 = pneg %p247
        %p691 = pneg %p271
        %p692 = pneg %p268
        %p693 = pneg %p292
        %p694 = pneg %p289
        %p695 = pneg %p313
        %p696 = pneg %p310
        %p697 = pneg %p334
        %p698 = pneg %p331
        %p699 = pneg %p355
        %p700 = pneg %p352
        %p701 = pneg %p376
        %p702 = pneg %p373
        %p703 = pneg %p397
        %p704 = pneg %p394
        %p705 = pneg %p418
        %p706 = pneg %p415
        %p707 = pneg %p439
        %p708 = pneg %p436
        %p709 = pneg %p460
        %p710 = pneg %p457
        %p711 = pneg %p481
        %p712 = pneg %p478
        %p713 = pneg %p502
        %p714 = pneg %p499
        %p715 = pneg %p523
        %p716 = pneg %p520
        %p717 = pneg %p549
        %p718 = pneg %p546
        %p719 = scmp.lt.s32.totalorder %s35, 1
        %s720 = scalar_select %p719, %s35, 1
        %s721 = scalar_lea.vmem %s23, %s720
        %p722 = scmp.lt.s32.totalorder %s35, 1
        %s723 = scalar_select %p722, %s35, 1
        %s724 = smul.addr %s723, 8
        %s725 = scalar_lea.vmem %s0, %s724
        %p726 = scmp.lt.s32.totalorder %s35, 1
        %s727 = scalar_select %p726, %s35, 1
        %s728 = scalar_lea.vmem %s1, %s727
        %p729 = scmp.lt.s32.totalorder %s35, 1
        %s730 = scalar_select %p729, %s35, 1
        %s731 = scalar_lea.vmem %s23, %s730
        %v733 = vld [vmem:[%s725] sm:$0xff]
        %v734 = vld [vmem:[%s3] sm:$0x1]
        %v735 = vld [vmem:[%s4] sm:$0x1]
        %vm736 = vcmask 261120
        %v737 = vsel %vm736, %v733, 0.0
        %738 = vadd.xlane.f32.xlu0 %v737
        %v739 = vpop.xlane.xlu0 %738
        %v740 = vrcp.pop 32.0
        %v741 = vmul.f32 32.0, %v740
        %v742 = vsub.f32 1.0, %v741
        %v743 = vmul.f32 %v740, %v742
        %v744 = vadd.f32 %v740, %v743
        %vm745 = vweird.f32 %v740
        %v746 = vsel %vm745, %v740, %v744
        %v747 = vmul.f32 %v739, %v746
        %v748 = vsub.f32 %v733, %v747
        %v749 = vmul.f32 %v748, %v748
        %v750 = vsel %vm736, %v749, 0.0
        %751 = vadd.xlane.f32.xlu0 %v750
        %v752 = vpop.xlane.xlu0 %751
        %v753 = vmul.f32 %v752, %v746
        %v754 = vadd.f32 %v753, 1e-12
        %v755 = vrsqrt.pop %v754
        %v756 = vmul.f32 %v755, %v754
        %v757 = vmul.f32 %v756, %v755
        %v758 = vmul.f32 0.5, %v757
        %v759 = vsub.f32 1.5, %v758
        %v760 = vmul.f32 %v755, %v759
        %vm761 = vweird.f32 %v754
        %vm762 = vweird.f32 %v755
        %vm763 = vmor %vm761, %vm762
        %v764 = vsel %vm763, %v755, %v760
        %v765 = vmul.f32 %v748, %v764
        %v767 = vperm.slane %v734, 0
        %v769 = vmul.f32 %v765, %v767
        %v771 = vperm.slane %v735, 0
        %v773 = vadd.f32 %v769, %v771
        %v774 = vld [vmem:[%s728] sm:$0x1]
        %v775 = vsub.f32 %v774, 1.0
        %v776 = vmul.f32 %v775, 1e+09
        %v778 = vperm.slane %v776, 0
        %v780 = vpack.c.bf16 %v773, %v773
        %781 = vxpose.xlu0.b32.start [1/16] %v773, 128
        %782 = vxpose.xlu0.b32.cont [2/16] 0.0, 128
        %783 = vxpose.xlu0.b32.cont [3/16] 0.0, 128
        %784 = vxpose.xlu0.b32.cont [4/16] 0.0, 128
        %785 = vxpose.xlu0.b32.cont [5/16] 0.0, 128
        %786 = vxpose.xlu0.b32.cont [6/16] 0.0, 128
        %787 = vxpose.xlu0.b32.cont [7/16] 0.0, 128
        %788 = vxpose.xlu0.b32.cont [8/16] 0.0, 128
        %789 = vxpose.xlu0.b32.cont [9/16] 0.0, 128
        %790 = vxpose.xlu0.b32.cont [10/16] 0.0, 128
        %791 = vxpose.xlu0.b32.cont [11/16] 0.0, 128
        %792 = vxpose.xlu0.b32.cont [12/16] 0.0, 128
        %793 = vxpose.xlu0.b32.cont [13/16] 0.0, 128
        %794 = vxpose.xlu0.b32.cont [14/16] 0.0, 128
        %795 = vxpose.xlu0.b32.cont [15/16] 0.0, 128
        %796 = vxpose.xlu0.b32.end [16/16] 0.0, 128
        %v797 = vpop.trf.xlu0
        %v798 = vpop.trf.xlu0
        %v799 = vpop.trf.xlu0
        %v800 = vpop.trf.xlu0
        %v801 = vpop.trf.xlu0
        %v802 = vpop.trf.xlu0
        %v803 = vpop.trf.xlu0
        %v804 = vpop.trf.xlu0
        %v805 = vpop.trf.xlu0
        %v806 = vpop.trf.xlu0
        %v807 = vpop.trf.xlu0
        %v808 = vpop.trf.xlu0
        %v809 = vpop.trf.xlu0
        %v810 = vpop.trf.xlu0
        %v811 = vpop.trf.xlu0
        %v812 = vpop.trf.xlu0
        %v813 = vpack.c.bf16 %v798, %v797
        %v814 = vpack.c.bf16 %v800, %v799
        %v815 = vld [vmem:[%s5] sm:$0xf]
        %v816 = vld [vmem:[%s5 + $0x4] sm:$0xf]
        %v817 = vld [vmem:[%s5 + $0x8] sm:$0xf]
        %v818 = vld [vmem:[%s5 + $0xc] sm:$0xf]
        %v819 = vld [vmem:[%s6] sm:$0x1]
        %v821 = vperm.slane %v819, 0
        %v827 = vunpack.c.l.b16 %v815
        %v828 = vunpack.c.l.b16 %v816
        %v829 = vunpack.c.l.b16 %v817
        %v830 = vunpack.c.l.b16 %v818
        %v831 = vpack.c.b16 %v828, %v827
        %v832 = vpack.c.b16 %v830, %v829
        %v836 = vsel %vm736, %v780, 0
        %838 = vmatpush.bf16.msra.mxu0 0
        %839 = vmatpush.bf16.msra.mxu0 0
        %840 = vmatpush.bf16.msra.mxu0 0
        %841 = vmatpush.bf16.msra.mxu0 0
        %842 = vmatpush.bf16.msra.mxu0 0
        %843 = vmatpush.bf16.msra.mxu0 0
        %844 = vmatpush.bf16.msra.mxu0 %v832
        %845 = vmatpush.bf16.msra.mxu0 %v831
        %846 = vmatmul.bf16.gmra.mxu0 %v836
        %v847 = vpop.f32.mrf.mxu0
        %v848 = vadd.f32 %v821, %v847
        %v849 = vpop.f32.mrf.mxu0
        %850 = vdwg.mxu0
        %v851 = vld [vmem:[%s7] sm:$0xf]
        %v852 = vld [vmem:[%s7 + $0x4] sm:$0xf]
        %v853 = vld [vmem:[%s8] sm:$0xff]
        %v854 = vld [vmem:[%s8 + $0x8] sm:$0xff]
        %856 = vset.pattern.permute.xlu0 0
        %857 = vperm.xlu0 %856, %v853
        %v858 = vpop.permute.xlu0 %857
        %861 = vset.pattern.permute.xlu0 0
        %862 = vperm.xlu0 %861, %v854
        %v863 = vpop.permute.xlu0 %862
        %v867 = vunpack.c.l.b16 %v851
        %v868 = vunpack.c.l.b16 %v852
        %v869 = vpack.c.b16 %v868, %v867
        %v871 = vsel %vm736, %v869, 0
        %873 = vmatpush.bf16.msra.mxu0 0
        %874 = vmatpush.bf16.msra.mxu0 0
        %875 = vmatpush.bf16.msra.mxu0 0
        %876 = vmatpush.bf16.msra.mxu0 0
        %877 = vmatpush.bf16.msra.mxu0 0
        %878 = vmatpush.bf16.msra.mxu0 0
        %879 = vmatpush.bf16.msra.mxu0 %v814
        %880 = vmatpush.bf16.msra.mxu0 %v813
        %881 = vmatmul.bf16.gmra.mxu0 %v871
        %v882 = vpop.f32.mrf.mxu0
        %v883 = vadd.f32 %v858, %v882
        %v884 = vpop.f32.mrf.mxu0
        %v885 = vadd.f32 %v863, %v884
        %886 = vdwg.mxu0
        %v887 = vld [vmem:[%s9] sm:$0xf]
        %v888 = vld [vmem:[%s9 + $0x4] sm:$0xf]
        %v889 = vld [vmem:[%s9 + $0x8] sm:$0xf]
        %v890 = vld [vmem:[%s9 + $0xc] sm:$0xf]
        %v891 = vld [vmem:[%s10] sm:$0x1]
        %v893 = vperm.slane %v891, 0
        %v899 = vunpack.c.l.b16 %v887
        %v900 = vunpack.c.l.b16 %v888
        %v901 = vunpack.c.l.b16 %v889
        %v902 = vunpack.c.l.b16 %v890
        %v903 = vpack.c.b16 %v900, %v899
        %v904 = vpack.c.b16 %v902, %v901
        %907 = vmatpush.bf16.msra.mxu0 0
        %908 = vmatpush.bf16.msra.mxu0 0
        %909 = vmatpush.bf16.msra.mxu0 0
        %910 = vmatpush.bf16.msra.mxu0 0
        %911 = vmatpush.bf16.msra.mxu0 0
        %912 = vmatpush.bf16.msra.mxu0 0
        %913 = vmatpush.bf16.msra.mxu0 %v904
        %914 = vmatpush.bf16.msra.mxu0 %v903
        %915 = vmatmul.bf16.gmra.mxu0 %v836
        %v916 = vpop.f32.mrf.mxu0
        %v917 = vadd.f32 %v893, %v916
        %v918 = vpop.f32.mrf.mxu0
        %919 = vdwg.mxu0
        %v920 = vpack.c.bf16 %v848, %v848
        %v921 = vpack.c.bf16 %v885, %v883
        %vm922 = vcmask 130048
        %v924 = vsel %vm922, %v920, 0
        %926 = vmatpush.bf16.msra.mxu0 0
        %927 = vmatpush.bf16.msra.mxu0 0
        %928 = vmatpush.bf16.msra.mxu0 0
        %929 = vmatpush.bf16.msra.mxu0 0
        %930 = vmatpush.bf16.msra.mxu0 0
        %931 = vmatpush.bf16.msra.mxu0 0
        %932 = vmatpush.bf16.msra.mxu0 0
        %933 = vmatpush.bf16.msra.mxu0 %v921
        %934 = vmatmul.bf16.gmra.mxu0 %v924
        %v935 = vpop.f32.mrf.mxu0
        %v936 = vadd.f32 0.0, %v935
        %v937 = vpop.f32.mrf.mxu0
        %938 = vdwg.mxu0
        %v939 = vmul.f32 %v936, 0.25
        %v940 = vadd.f32 %v939, %v778
        %vm941 = vcmask 64512
        %v942 = vsel %vm941, %v940, -inf
        %943 = vmax.xlane.f32.xlu0 %v942
        %v944 = vpop.xlane.xlu0 %943
        %v945 = vsub.f32 %v940, %v944
        %v946 = vmul.f32 %v945, 1.442695
        %v947 = vpow.pop %v946
        %v948 = vsel %vm941, %v947, 0.0
        %949 = vadd.xlane.f32.xlu0 %v948
        %v950 = vpop.xlane.xlu0 %949
        %v951 = vrcp.pop %v950
        %v952 = vmul.f32 %v947, %v951
        %v953 = vpack.c.bf16 %v952, %v952
        %v954 = vpack.c.bf16 %v917, %v917
        %v956 = vsel %vm941, %v953, 0
        %vm958 = vcmask 1043456
        %v960 = vsel %vm958, %v954, 0
        %962 = vmatpush.bf16.msra.mxu0 0
        %963 = vmatpush.bf16.msra.mxu0 0
        %964 = vmatpush.bf16.msra.mxu0 0
        %965 = vmatpush.bf16.msra.mxu0 0
        %966 = vmatpush.bf16.msra.mxu0 0
        %967 = vmatpush.bf16.msra.mxu0 0
        %968 = vmatpush.bf16.msra.mxu0 0
        %969 = vmatpush.bf16.msra.mxu0 %v960
        %970 = vmatmul.bf16.gmra.mxu0 %v956
        %v971 = vpop.f32.mrf.mxu0
        %v972 = vadd.f32 0.0, %v971
        %v973 = vpop.f32.mrf.mxu0
        %974 = vdwg.mxu0
        %s975 = scalar_lea.vmem %s5, 16
        %v976 = vld [vmem:[%s975] sm:$0xf]
        %v977 = vld [vmem:[%s975 + $0x4] sm:$0xf]
        %v978 = vld [vmem:[%s975 + $0x8] sm:$0xf]
        %v979 = vld [vmem:[%s975 + $0xc] sm:$0xf]
        %s980 = scalar_lea.vmem %s6, 1
        %v981 = vld [vmem:[%s980] sm:$0x1]
        %v983 = vperm.slane %v981, 0
        %v989 = vunpack.c.l.b16 %v976
        %v990 = vunpack.c.l.b16 %v977
        %v991 = vunpack.c.l.b16 %v978
        %v992 = vunpack.c.l.b16 %v979
        %v993 = vpack.c.b16 %v990, %v989
        %v994 = vpack.c.b16 %v992, %v991
        %997 = vmatpush.bf16.msra.mxu0 0
        %998 = vmatpush.bf16.msra.mxu0 0
        %999 = vmatpush.bf16.msra.mxu0 0
        %1000 = vmatpush.bf16.msra.mxu0 0
        %1001 = vmatpush.bf16.msra.mxu0 0
        %1002 = vmatpush.bf16.msra.mxu0 0
        %1003 = vmatpush.bf16.msra.mxu0 %v994
        %1004 = vmatpush.bf16.msra.mxu0 %v993
        %1005 = vmatmul.bf16.gmra.mxu0 %v836
        %v1006 = vpop.f32.mrf.mxu0
        %v1007 = vadd.f32 %v983, %v1006
        %v1008 = vpop.f32.mrf.mxu0
        %1009 = vdwg.mxu0
        %s1010 = scalar_lea.vmem %s7, 8
        %v1011 = vld [vmem:[%s1010] sm:$0xf]
        %v1012 = vld [vmem:[%s1010 + $0x4] sm:$0xf]
        %s1013 = scalar_lea.vmem %s8, 16
        %v1014 = vld [vmem:[%s1013] sm:$0xff]
        %v1015 = vld [vmem:[%s1013 + $0x8] sm:$0xff]
        %1017 = vset.pattern.permute.xlu0 0
        %1018 = vperm.xlu0 %1017, %v1014
        %v1019 = vpop.permute.xlu0 %1018
        %1022 = vset.pattern.permute.xlu0 0
        %1023 = vperm.xlu0 %1022, %v1015
        %v1024 = vpop.permute.xlu0 %1023
        %v1028 = vunpack.c.l.b16 %v1011
        %v1029 = vunpack.c.l.b16 %v1012
        %v1030 = vpack.c.b16 %v1029, %v1028
        %v1032 = vsel %vm736, %v1030, 0
        %1034 = vmatpush.bf16.msra.mxu0 0
        %1035 = vmatpush.bf16.msra.mxu0 0
        %1036 = vmatpush.bf16.msra.mxu0 0
        %1037 = vmatpush.bf16.msra.mxu0 0
        %1038 = vmatpush.bf16.msra.mxu0 0
        %1039 = vmatpush.bf16.msra.mxu0 0
        %1040 = vmatpush.bf16.msra.mxu0 %v814
        %1041 = vmatpush.bf16.msra.mxu0 %v813
        %1042 = vmatmul.bf16.gmra.mxu0 %v1032
        %v1043 = vpop.f32.mrf.mxu0
        %v1044 = vadd.f32 %v1019, %v1043
        %v1045 = vpop.f32.mrf.mxu0
        %v1046 = vadd.f32 %v1024, %v1045
        %1047 = vdwg.mxu0
        %s1048 = scalar_lea.vmem %s9, 16
        %v1049 = vld [vmem:[%s1048] sm:$0xf]
        %v1050 = vld [vmem:[%s1048 + $0x4] sm:$0xf]
        %v1051 = vld [vmem:[%s1048 + $0x8] sm:$0xf]
        %v1052 = vld [vmem:[%s1048 + $0xc] sm:$0xf]
        %s1053 = scalar_lea.vmem %s10, 1
        %v1054 = vld [vmem:[%s1053] sm:$0x1]
        %v1056 = vperm.slane %v1054, 0
        %v1062 = vunpack.c.l.b16 %v1049
        %v1063 = vunpack.c.l.b16 %v1050
        %v1064 = vunpack.c.l.b16 %v1051
        %v1065 = vunpack.c.l.b16 %v1052
        %v1066 = vpack.c.b16 %v1063, %v1062
        %v1067 = vpack.c.b16 %v1065, %v1064
        %1070 = vmatpush.bf16.msra.mxu0 0
        %1071 = vmatpush.bf16.msra.mxu0 0
        %1072 = vmatpush.bf16.msra.mxu0 0
        %1073 = vmatpush.bf16.msra.mxu0 0
        %1074 = vmatpush.bf16.msra.mxu0 0
        %1075 = vmatpush.bf16.msra.mxu0 0
        %1076 = vmatpush.bf16.msra.mxu0 %v1067
        %1077 = vmatpush.bf16.msra.mxu0 %v1066
        %1078 = vmatmul.bf16.gmra.mxu0 %v836
        %v1079 = vpop.f32.mrf.mxu0
        %v1080 = vadd.f32 %v1056, %v1079
        %v1081 = vpop.f32.mrf.mxu0
        %1082 = vdwg.mxu0
        %v1083 = vpack.c.bf16 %v1007, %v1007
        %v1084 = vpack.c.bf16 %v1046, %v1044
        %v1086 = vsel %vm922, %v1083, 0
        %1088 = vmatpush.bf16.msra.mxu0 0
        %1089 = vmatpush.bf16.msra.mxu0 0
        %1090 = vmatpush.bf16.msra.mxu0 0
        %1091 = vmatpush.bf16.msra.mxu0 0
        %1092 = vmatpush.bf16.msra.mxu0 0
        %1093 = vmatpush.bf16.msra.mxu0 0
        %1094 = vmatpush.bf16.msra.mxu0 0
        %1095 = vmatpush.bf16.msra.mxu0 %v1084
        %1096 = vmatmul.bf16.gmra.mxu0 %v1086
        %v1097 = vpop.f32.mrf.mxu0
        %v1098 = vadd.f32 0.0, %v1097
        %v1099 = vpop.f32.mrf.mxu0
        %1100 = vdwg.mxu0
        %v1101 = vmul.f32 %v1098, 0.25
        %v1102 = vadd.f32 %v1101, %v778
        %v1103 = vsel %vm941, %v1102, -inf
        %1104 = vmax.xlane.f32.xlu0 %v1103
        %v1105 = vpop.xlane.xlu0 %1104
        %v1106 = vsub.f32 %v1102, %v1105
        %v1107 = vmul.f32 %v1106, 1.442695
        %v1108 = vpow.pop %v1107
        %v1109 = vsel %vm941, %v1108, 0.0
        %1110 = vadd.xlane.f32.xlu0 %v1109
        %v1111 = vpop.xlane.xlu0 %1110
        %v1112 = vrcp.pop %v1111
        %v1113 = vmul.f32 %v1108, %v1112
        %v1114 = vpack.c.bf16 %v1113, %v1113
        %v1115 = vpack.c.bf16 %v1080, %v1080
        %v1117 = vsel %vm941, %v1114, 0
        %v1120 = vsel %vm958, %v1115, 0
        %1122 = vmatpush.bf16.msra.mxu0 0
        %1123 = vmatpush.bf16.msra.mxu0 0
        %1124 = vmatpush.bf16.msra.mxu0 0
        %1125 = vmatpush.bf16.msra.mxu0 0
        %1126 = vmatpush.bf16.msra.mxu0 0
        %1127 = vmatpush.bf16.msra.mxu0 0
        %1128 = vmatpush.bf16.msra.mxu0 0
        %1129 = vmatpush.bf16.msra.mxu0 %v1120
        %1130 = vmatmul.bf16.gmra.mxu0 %v1117
        %v1131 = vpop.f32.mrf.mxu0
        %v1132 = vadd.f32 0.0, %v1131
        %v1133 = vpop.f32.mrf.mxu0
        %1134 = vdwg.mxu0
        %1136 = vrot.lane.b32.xlu0 %v1132, 16
        %v1137 = vpop.permute.xlu0 %1136
        %v1139 = vsel %vm922, %v972, %v1137
        %v1140 = vpack.c.bf16 %v1139, %v1139
        %v1141 = vld [vmem:[%s11] sm:$0xf]
        %v1142 = vld [vmem:[%s11 + $0x4] sm:$0xf]
        %v1143 = vld [vmem:[%s11 + $0x8] sm:$0xf]
        %v1144 = vld [vmem:[%s11 + $0xc] sm:$0xf]
        %v1145 = vld [vmem:[%s12] sm:$0x1]
        %v1147 = vperm.slane %v1145, 0
        %v1153 = vunpack.c.l.b16 %v1141
        %v1154 = vunpack.c.l.b16 %v1142
        %v1155 = vunpack.c.l.b16 %v1143
        %v1156 = vunpack.c.l.b16 %v1144
        %v1157 = vpack.c.b16 %v1154, %v1153
        %v1158 = vpack.c.b16 %v1156, %v1155
        %v1162 = vsel %vm736, %v1140, 0
        %1164 = vmatpush.bf16.msra.mxu0 0
        %1165 = vmatpush.bf16.msra.mxu0 0
        %1166 = vmatpush.bf16.msra.mxu0 0
        %1167 = vmatpush.bf16.msra.mxu0 0
        %1168 = vmatpush.bf16.msra.mxu0 0
        %1169 = vmatpush.bf16.msra.mxu0 0
        %1170 = vmatpush.bf16.msra.mxu0 %v1158
        %1171 = vmatpush.bf16.msra.mxu0 %v1157
        %1172 = vmatmul.bf16.gmra.mxu0 %v1162
        %v1173 = vpop.f32.mrf.mxu0
        %v1174 = vadd.f32 %v1147, %v1173
        %v1175 = vpop.f32.mrf.mxu0
        %1176 = vdwg.mxu0
        %v1177 = vadd.f32 %v1174, %v773
        %v1178 = vld [vmem:[%s13] sm:$0x1]
        %v1179 = vld [vmem:[%s14] sm:$0x1]
        %v1180 = vsel %vm736, %v1177, 0.0
        %1181 = vadd.xlane.f32.xlu0 %v1180
        %v1182 = vpop.xlane.xlu0 %1181
        %v1183 = vmul.f32 %v1182, %v746
        %v1184 = vsub.f32 %v1177, %v1183
        %v1185 = vmul.f32 %v1184, %v1184
        %v1186 = vsel %vm736, %v1185, 0.0
        %1187 = vadd.xlane.f32.xlu0 %v1186
        %v1188 = vpop.xlane.xlu0 %1187
        %v1189 = vmul.f32 %v1188, %v746
        %v1190 = vadd.f32 %v1189, 1e-12
        %v1191 = vrsqrt.pop %v1190
        %v1192 = vmul.f32 %v1191, %v1190
        %v1193 = vmul.f32 %v1192, %v1191
        %v1194 = vmul.f32 0.5, %v1193
        %v1195 = vsub.f32 1.5, %v1194
        %v1196 = vmul.f32 %v1191, %v1195
        %vm1197 = vweird.f32 %v1190
        %vm1198 = vweird.f32 %v1191
        %vm1199 = vmor %vm1197, %vm1198
        %v1200 = vsel %vm1199, %v1191, %v1196
        %v1201 = vmul.f32 %v1184, %v1200
        %v1203 = vperm.slane %v1178, 0
        %v1205 = vmul.f32 %v1201, %v1203
        %v1207 = vperm.slane %v1179, 0
        %v1209 = vadd.f32 %v1205, %v1207
        %v1210 = vpack.c.bf16 %v1209, %v1209
        %v1211 = vld [vmem:[%s15] sm:$0xf]
        %v1212 = vld [vmem:[%s15 + $0x4] sm:$0xf]
        %v1213 = vld [vmem:[%s15 + $0x8] sm:$0xf]
        %v1214 = vld [vmem:[%s15 + $0xc] sm:$0xf]
        %v1215 = vld [vmem:[%s16] sm:$0x1]
        %v1217 = vperm.slane %v1215, 0
        %v1223 = vunpack.c.l.b16 %v1211
        %v1224 = vunpack.c.l.b16 %v1212
        %v1225 = vunpack.c.l.b16 %v1213
        %v1226 = vunpack.c.l.b16 %v1214
        %v1227 = vpack.c.b16 %v1224, %v1223
        %v1228 = vpack.c.b16 %v1226, %v1225
        %v1232 = vsel %vm736, %v1210, 0
        %1234 = vmatpush.bf16.msra.mxu0 0
        %1235 = vmatpush.bf16.msra.mxu0 0
        %1236 = vmatpush.bf16.msra.mxu0 0
        %1237 = vmatpush.bf16.msra.mxu0 0
        %1238 = vmatpush.bf16.msra.mxu0 0
        %1239 = vmatpush.bf16.msra.mxu0 0
        %1240 = vmatpush.bf16.msra.mxu0 %v1228
        %1241 = vmatpush.bf16.msra.mxu0 %v1227
        %1242 = vmatmul.bf16.gmra.mxu0 %v1232
        %v1243 = vpop.f32.mrf.mxu0
        %v1244 = vadd.f32 %v1217, %v1243
        %v1245 = vpop.f32.mrf.mxu0
        %1246 = vdwg.mxu0
        %v1247 = vmul.f32 %v1244, 0.5
        %v1248 = vmul.f32 %v1244, 0.044715
        %v1249 = vmul.f32 %v1248, %v1244
        %v1250 = vmul.f32 %v1249, %v1244
        %v1251 = vadd.f32 %v1244, %v1250
        %v1252 = vmul.f32 %v1251, 0.7978846
        %v1253 = vtanh.pop %v1252
        %v1254 = vadd.f32 %v1253, 1.0
        %v1255 = vmul.f32 %v1247, %v1254
        %v1256 = vpack.c.bf16 %v1255, %v1255
        %v1257 = vld [vmem:[%s17] sm:$0xf]
        %v1258 = vld [vmem:[%s17 + $0x4] sm:$0xf]
        %v1259 = vld [vmem:[%s17 + $0x8] sm:$0xf]
        %v1260 = vld [vmem:[%s17 + $0xc] sm:$0xf]
        %v1261 = vld [vmem:[%s17 + $0x10] sm:$0xf]
        %v1262 = vld [vmem:[%s17 + $0x14] sm:$0xf]
        %v1263 = vld [vmem:[%s17 + $0x18] sm:$0xf]
        %v1264 = vld [vmem:[%s17 + $0x1c] sm:$0xf]
        %v1265 = vld [vmem:[%s18] sm:$0x1]
        %v1267 = vperm.slane %v1265, 0
        %v1277 = vunpack.c.l.b16 %v1257
        %v1278 = vunpack.c.l.b16 %v1258
        %v1279 = vunpack.c.l.b16 %v1259
        %v1280 = vunpack.c.l.b16 %v1260
        %v1281 = vunpack.c.l.b16 %v1261
        %v1282 = vunpack.c.l.b16 %v1262
        %v1283 = vunpack.c.l.b16 %v1263
        %v1284 = vunpack.c.l.b16 %v1264
        %v1285 = vpack.c.b16 %v1278, %v1277
        %v1286 = vpack.c.b16 %v1280, %v1279
        %v1287 = vpack.c.b16 %v1282, %v1281
        %v1288 = vpack.c.b16 %v1284, %v1283
        %vm1293 = vcmask 523264
        %v1295 = vsel %vm1293, %v1256, 0
        %1297 = vmatpush.bf16.msra.mxu0 0
        %1298 = vmatpush.bf16.msra.mxu0 0
        %1299 = vmatpush.bf16.msra.mxu0 0
        %1300 = vmatpush.bf16.msra.mxu0 0
        %1301 = vmatpush.bf16.msra.mxu0 %v1288
        %1302 = vmatpush.bf16.msra.mxu0 %v1287
        %1303 = vmatpush.bf16.msra.mxu0 %v1286
        %1304 = vmatpush.bf16.msra.mxu0 %v1285
        %1305 = vmatmul.bf16.gmra.mxu0 %v1295
        %v1306 = vpop.f32.mrf.mxu0
        %v1307 = vadd.f32 %v1267, %v1306
        %v1308 = vpop.f32.mrf.mxu0
        %1309 = vdwg.mxu0
        %v1310 = vadd.f32 %v1307, %v1209
        %v1311 = vld [vmem:[%s19] sm:$0x1]
        %v1312 = vld [vmem:[%s20] sm:$0x1]
        %v1313 = vsel %vm736, %v1310, 0.0
        %1314 = vadd.xlane.f32.xlu0 %v1313
        %v1315 = vpop.xlane.xlu0 %1314
        %v1316 = vmul.f32 %v1315, %v746
        %v1317 = vsub.f32 %v1310, %v1316
        %v1318 = vmul.f32 %v1317, %v1317
        %v1319 = vsel %vm736, %v1318, 0.0
        %1320 = vadd.xlane.f32.xlu0 %v1319
        %v1321 = vpop.xlane.xlu0 %1320
        %v1322 = vmul.f32 %v1321, %v746
        %v1323 = vadd.f32 %v1322, 1e-12
        %v1324 = vrsqrt.pop %v1323
        %v1325 = vmul.f32 %v1324, %v1323
        %v1326 = vmul.f32 %v1325, %v1324
        %v1327 = vmul.f32 0.5, %v1326
        %v1328 = vsub.f32 1.5, %v1327
        %v1329 = vmul.f32 %v1324, %v1328
        %vm1330 = vweird.f32 %v1323
        %vm1331 = vweird.f32 %v1324
        %vm1332 = vmor %vm1330, %vm1331
        %v1333 = vsel %vm1332, %v1324, %v1329
        %v1334 = vmul.f32 %v1317, %v1333
        %v1336 = vperm.slane %v1311, 0
        %v1338 = vmul.f32 %v1334, %v1336
        %v1340 = vperm.slane %v1312, 0
        %v1342 = vadd.f32 %v1338, %v1340
        %v1343 = vpack.c.bf16 %v1342, %v1342
        %1344 = vxpose.xlu0.b32.start [1/16] %v1342, 128
        %1345 = vxpose.xlu0.b32.cont [2/16] 0.0, 128
        %1346 = vxpose.xlu0.b32.cont [3/16] 0.0, 128
        %1347 = vxpose.xlu0.b32.cont [4/16] 0.0, 128
        %1348 = vxpose.xlu0.b32.cont [5/16] 0.0, 128
        %1349 = vxpose.xlu0.b32.cont [6/16] 0.0, 128
        %1350 = vxpose.xlu0.b32.cont [7/16] 0.0, 128
        %1351 = vxpose.xlu0.b32.cont [8/16] 0.0, 128
        %1352 = vxpose.xlu0.b32.cont [9/16] 0.0, 128
        %1353 = vxpose.xlu0.b32.cont [10/16] 0.0, 128
        %1354 = vxpose.xlu0.b32.cont [11/16] 0.0, 128
        %1355 = vxpose.xlu0.b32.cont [12/16] 0.0, 128
        %1356 = vxpose.xlu0.b32.cont [13/16] 0.0, 128
        %1357 = vxpose.xlu0.b32.cont [14/16] 0.0, 128
        %1358 = vxpose.xlu0.b32.cont [15/16] 0.0, 128
        %1359 = vxpose.xlu0.b32.end [16/16] 0.0, 128
        %v1360 = vpop.trf.xlu0
        %v1361 = vpop.trf.xlu0
        %v1362 = vpop.trf.xlu0
        %v1363 = vpop.trf.xlu0
        %v1364 = vpop.trf.xlu0
        %v1365 = vpop.trf.xlu0
        %v1366 = vpop.trf.xlu0
        %v1367 = vpop.trf.xlu0
        %v1368 = vpop.trf.xlu0
        %v1369 = vpop.trf.xlu0
        %v1370 = vpop.trf.xlu0
        %v1371 = vpop.trf.xlu0
        %v1372 = vpop.trf.xlu0
        %v1373 = vpop.trf.xlu0
        %v1374 = vpop.trf.xlu0
        %v1375 = vpop.trf.xlu0
        %v1376 = vpack.c.bf16 %v1361, %v1360
        %v1377 = vpack.c.bf16 %v1363, %v1362
        %s1378 = scalar_lea.vmem %s5, 32
        %v1379 = vld [vmem:[%s1378] sm:$0xf]
        %v1380 = vld [vmem:[%s1378 + $0x4] sm:$0xf]
        %v1381 = vld [vmem:[%s1378 + $0x8] sm:$0xf]
        %v1382 = vld [vmem:[%s1378 + $0xc] sm:$0xf]
        %s1383 = scalar_lea.vmem %s6, 2
        %v1384 = vld [vmem:[%s1383] sm:$0x1]
        %v1386 = vperm.slane %v1384, 0
        %v1392 = vunpack.c.l.b16 %v1379
        %v1393 = vunpack.c.l.b16 %v1380
        %v1394 = vunpack.c.l.b16 %v1381
        %v1395 = vunpack.c.l.b16 %v1382
        %v1396 = vpack.c.b16 %v1393, %v1392
        %v1397 = vpack.c.b16 %v1395, %v1394
        %v1401 = vsel %vm736, %v1343, 0
        %1403 = vmatpush.bf16.msra.mxu0 0
        %1404 = vmatpush.bf16.msra.mxu0 0
        %1405 = vmatpush.bf16.msra.mxu0 0
        %1406 = vmatpush.bf16.msra.mxu0 0
        %1407 = vmatpush.bf16.msra.mxu0 0
        %1408 = vmatpush.bf16.msra.mxu0 0
        %1409 = vmatpush.bf16.msra.mxu0 %v1397
        %1410 = vmatpush.bf16.msra.mxu0 %v1396
        %1411 = vmatmul.bf16.gmra.mxu0 %v1401
        %v1412 = vpop.f32.mrf.mxu0
        %v1413 = vadd.f32 %v1386, %v1412
        %v1414 = vpop.f32.mrf.mxu0
        %1415 = vdwg.mxu0
        %s1416 = scalar_lea.vmem %s7, 16
        %v1417 = vld [vmem:[%s1416] sm:$0xf]
        %v1418 = vld [vmem:[%s1416 + $0x4] sm:$0xf]
        %s1419 = scalar_lea.vmem %s8, 32
        %v1420 = vld [vmem:[%s1419] sm:$0xff]
        %v1421 = vld [vmem:[%s1419 + $0x8] sm:$0xff]
        %1423 = vset.pattern.permute.xlu0 0
        %1424 = vperm.xlu0 %1423, %v1420
        %v1425 = vpop.permute.xlu0 %1424
        %1428 = vset.pattern.permute.xlu0 0
        %1429 = vperm.xlu0 %1428, %v1421
        %v1430 = vpop.permute.xlu0 %1429
        %v1434 = vunpack.c.l.b16 %v1417
        %v1435 = vunpack.c.l.b16 %v1418
        %v1436 = vpack.c.b16 %v1435, %v1434
        %v1438 = vsel %vm736, %v1436, 0
        %1440 = vmatpush.bf16.msra.mxu0 0
        %1441 = vmatpush.bf16.msra.mxu0 0
        %1442 = vmatpush.bf16.msra.mxu0 0
        %1443 = vmatpush.bf16.msra.mxu0 0
        %1444 = vmatpush.bf16.msra.mxu0 0
        %1445 = vmatpush.bf16.msra.mxu0 0
        %1446 = vmatpush.bf16.msra.mxu0 %v1377
        %1447 = vmatpush.bf16.msra.mxu0 %v1376
        %1448 = vmatmul.bf16.gmra.mxu0 %v1438
        %v1449 = vpop.f32.mrf.mxu0
        %v1450 = vadd.f32 %v1425, %v1449
        %v1451 = vpop.f32.mrf.mxu0
        %v1452 = vadd.f32 %v1430, %v1451
        %1453 = vdwg.mxu0
        %s1454 = scalar_lea.vmem %s9, 32
        %v1455 = vld [vmem:[%s1454] sm:$0xf]
        %v1456 = vld [vmem:[%s1454 + $0x4] sm:$0xf]
        %v1457 = vld [vmem:[%s1454 + $0x8] sm:$0xf]
        %v1458 = vld [vmem:[%s1454 + $0xc] sm:$0xf]
        %s1459 = scalar_lea.vmem %s10, 2
        %v1460 = vld [vmem:[%s1459] sm:$0x1]
        %v1462 = vperm.slane %v1460, 0
        %v1468 = vunpack.c.l.b16 %v1455
        %v1469 = vunpack.c.l.b16 %v1456
        %v1470 = vunpack.c.l.b16 %v1457
        %v1471 = vunpack.c.l.b16 %v1458
        %v1472 = vpack.c.b16 %v1469, %v1468
        %v1473 = vpack.c.b16 %v1471, %v1470
        %1476 = vmatpush.bf16.msra.mxu0 0
        %1477 = vmatpush.bf16.msra.mxu0 0
        %1478 = vmatpush.bf16.msra.mxu0 0
        %1479 = vmatpush.bf16.msra.mxu0 0
        %1480 = vmatpush.bf16.msra.mxu0 0
        %1481 = vmatpush.bf16.msra.mxu0 0
        %1482 = vmatpush.bf16.msra.mxu0 %v1473
        %1483 = vmatpush.bf16.msra.mxu0 %v1472
        %1484 = vmatmul.bf16.gmra.mxu0 %v1401
        %v1485 = vpop.f32.mrf.mxu0
        %v1486 = vadd.f32 %v1462, %v1485
        %v1487 = vpop.f32.mrf.mxu0
        %1488 = vdwg.mxu0
        %v1489 = vpack.c.bf16 %v1413, %v1413
        %v1490 = vpack.c.bf16 %v1452, %v1450
        %v1492 = vsel %vm922, %v1489, 0
        %1494 = vmatpush.bf16.msra.mxu0 0
        %1495 = vmatpush.bf16.msra.mxu0 0
        %1496 = vmatpush.bf16.msra.mxu0 0
        %1497 = vmatpush.bf16.msra.mxu0 0
        %1498 = vmatpush.bf16.msra.mxu0 0
        %1499 = vmatpush.bf16.msra.mxu0 0
        %1500 = vmatpush.bf16.msra.mxu0 0
        %1501 = vmatpush.bf16.msra.mxu0 %v1490
        %1502 = vmatmul.bf16.gmra.mxu0 %v1492
        %v1503 = vpop.f32.mrf.mxu0
        %v1504 = vadd.f32 0.0, %v1503
        %v1505 = vpop.f32.mrf.mxu0
        %1506 = vdwg.mxu0
        %v1507 = vmul.f32 %v1504, 0.25
        %v1508 = vadd.f32 %v1507, %v778
        %v1509 = vsel %vm941, %v1508, -inf
        %1510 = vmax.xlane.f32.xlu0 %v1509
        %v1511 = vpop.xlane.xlu0 %1510
        %v1512 = vsub.f32 %v1508, %v1511
        %v1513 = vmul.f32 %v1512, 1.442695
        %v1514 = vpow.pop %v1513
        %v1515 = vsel %vm941, %v1514, 0.0
        %1516 = vadd.xlane.f32.xlu0 %v1515
        %v1517 = vpop.xlane.xlu0 %1516
        %v1518 = vrcp.pop %v1517
        %v1519 = vmul.f32 %v1514, %v1518
        %v1520 = vpack.c.bf16 %v1519, %v1519
        %v1521 = vpack.c.bf16 %v1486, %v1486
        %v1523 = vsel %vm941, %v1520, 0
        %v1526 = vsel %vm958, %v1521, 0
        %1528 = vmatpush.bf16.msra.mxu0 0
        %1529 = vmatpush.bf16.msra.mxu0 0
        %1530 = vmatpush.bf16.msra.mxu0 0
        %1531 = vmatpush.bf16.msra.mxu0 0
        %1532 = vmatpush.bf16.msra.mxu0 0
        %1533 = vmatpush.bf16.msra.mxu0 0
        %1534 = vmatpush.bf16.msra.mxu0 0
        %1535 = vmatpush.bf16.msra.mxu0 %v1526
        %1536 = vmatmul.bf16.gmra.mxu0 %v1523
        %v1537 = vpop.f32.mrf.mxu0
        %v1538 = vadd.f32 0.0, %v1537
        %v1539 = vpop.f32.mrf.mxu0
        %1540 = vdwg.mxu0
        %s1541 = scalar_lea.vmem %s5, 48
        %v1542 = vld [vmem:[%s1541] sm:$0xf]
        %v1543 = vld [vmem:[%s1541 + $0x4] sm:$0xf]
        %v1544 = vld [vmem:[%s1541 + $0x8] sm:$0xf]
        %v1545 = vld [vmem:[%s1541 + $0xc] sm:$0xf]
        %s1546 = scalar_lea.vmem %s6, 3
        %v1547 = vld [vmem:[%s1546] sm:$0x1]
        %v1549 = vperm.slane %v1547, 0
        %v1555 = vunpack.c.l.b16 %v1542
        %v1556 = vunpack.c.l.b16 %v1543
        %v1557 = vunpack.c.l.b16 %v1544
        %v1558 = vunpack.c.l.b16 %v1545
        %v1559 = vpack.c.b16 %v1556, %v1555
        %v1560 = vpack.c.b16 %v1558, %v1557
        %1563 = vmatpush.bf16.msra.mxu0 0
        %1564 = vmatpush.bf16.msra.mxu0 0
        %1565 = vmatpush.bf16.msra.mxu0 0
        %1566 = vmatpush.bf16.msra.mxu0 0
        %1567 = vmatpush.bf16.msra.mxu0 0
        %1568 = vmatpush.bf16.msra.mxu0 0
        %1569 = vmatpush.bf16.msra.mxu0 %v1560
        %1570 = vmatpush.bf16.msra.mxu0 %v1559
        %1571 = vmatmul.bf16.gmra.mxu0 %v1401
        %v1572 = vpop.f32.mrf.mxu0
        %v1573 = vadd.f32 %v1549, %v1572
        %v1574 = vpop.f32.mrf.mxu0
        %1575 = vdwg.mxu0
        %s1576 = scalar_lea.vmem %s7, 24
        %v1577 = vld [vmem:[%s1576] sm:$0xf]
        %v1578 = vld [vmem:[%s1576 + $0x4] sm:$0xf]
        %s1579 = scalar_lea.vmem %s8, 48
        %v1580 = vld [vmem:[%s1579] sm:$0xff]
        %v1581 = vld [vmem:[%s1579 + $0x8] sm:$0xff]
        %1583 = vset.pattern.permute.xlu0 0
        %1584 = vperm.xlu0 %1583, %v1580
        %v1585 = vpop.permute.xlu0 %1584
        %1588 = vset.pattern.permute.xlu0 0
        %1589 = vperm.xlu0 %1588, %v1581
        %v1590 = vpop.permute.xlu0 %1589
        %v1594 = vunpack.c.l.b16 %v1577
        %v1595 = vunpack.c.l.b16 %v1578
        %v1596 = vpack.c.b16 %v1595, %v1594
        %v1598 = vsel %vm736, %v1596, 0
        %1600 = vmatpush.bf16.msra.mxu0 0
        %1601 = vmatpush.bf16.msra.mxu0 0
        %1602 = vmatpush.bf16.msra.mxu0 0
        %1603 = vmatpush.bf16.msra.mxu0 0
        %1604 = vmatpush.bf16.msra.mxu0 0
        %1605 = vmatpush.bf16.msra.mxu0 0
        %1606 = vmatpush.bf16.msra.mxu0 %v1377
        %1607 = vmatpush.bf16.msra.mxu0 %v1376
        %1608 = vmatmul.bf16.gmra.mxu0 %v1598
        %v1609 = vpop.f32.mrf.mxu0
        %v1610 = vadd.f32 %v1585, %v1609
        %v1611 = vpop.f32.mrf.mxu0
        %v1612 = vadd.f32 %v1590, %v1611
        %1613 = vdwg.mxu0
        %s1614 = scalar_lea.vmem %s9, 48
        %v1615 = vld [vmem:[%s1614] sm:$0xf]
        %v1616 = vld [vmem:[%s1614 + $0x4] sm:$0xf]
        %v1617 = vld [vmem:[%s1614 + $0x8] sm:$0xf]
        %v1618 = vld [vmem:[%s1614 + $0xc] sm:$0xf]
        %s1619 = scalar_lea.vmem %s10, 3
        %v1620 = vld [vmem:[%s1619] sm:$0x1]
        %v1622 = vperm.slane %v1620, 0
        %v1628 = vunpack.c.l.b16 %v1615
        %v1629 = vunpack.c.l.b16 %v1616
        %v1630 = vunpack.c.l.b16 %v1617
        %v1631 = vunpack.c.l.b16 %v1618
        %v1632 = vpack.c.b16 %v1629, %v1628
        %v1633 = vpack.c.b16 %v1631, %v1630
        %1636 = vmatpush.bf16.msra.mxu0 0
        %1637 = vmatpush.bf16.msra.mxu0 0
        %1638 = vmatpush.bf16.msra.mxu0 0
        %1639 = vmatpush.bf16.msra.mxu0 0
        %1640 = vmatpush.bf16.msra.mxu0 0
        %1641 = vmatpush.bf16.msra.mxu0 0
        %1642 = vmatpush.bf16.msra.mxu0 %v1633
        %1643 = vmatpush.bf16.msra.mxu0 %v1632
        %1644 = vmatmul.bf16.gmra.mxu0 %v1401
        %v1645 = vpop.f32.mrf.mxu0
        %v1646 = vadd.f32 %v1622, %v1645
        %v1647 = vpop.f32.mrf.mxu0
        %1648 = vdwg.mxu0
        %v1649 = vpack.c.bf16 %v1573, %v1573
        %v1650 = vpack.c.bf16 %v1612, %v1610
        %v1652 = vsel %vm922, %v1649, 0
        %1654 = vmatpush.bf16.msra.mxu0 0
        %1655 = vmatpush.bf16.msra.mxu0 0
        %1656 = vmatpush.bf16.msra.mxu0 0
        %1657 = vmatpush.bf16.msra.mxu0 0
        %1658 = vmatpush.bf16.msra.mxu0 0
        %1659 = vmatpush.bf16.msra.mxu0 0
        %1660 = vmatpush.bf16.msra.mxu0 0
        %1661 = vmatpush.bf16.msra.mxu0 %v1650
        %1662 = vmatmul.bf16.gmra.mxu0 %v1652
        %v1663 = vpop.f32.mrf.mxu0
        %v1664 = vadd.f32 0.0, %v1663
        %v1665 = vpop.f32.mrf.mxu0
        %1666 = vdwg.mxu0
        %v1667 = vmul.f32 %v1664, 0.25
        %v1668 = vadd.f32 %v1667, %v778
        %v1669 = vsel %vm941, %v1668, -inf
        %1670 = vmax.xlane.f32.xlu0 %v1669
        %v1671 = vpop.xlane.xlu0 %1670
        %v1672 = vsub.f32 %v1668, %v1671
        %v1673 = vmul.f32 %v1672, 1.442695
        %v1674 = vpow.pop %v1673
        %v1675 = vsel %vm941, %v1674, 0.0
        %1676 = vadd.xlane.f32.xlu0 %v1675
        %v1677 = vpop.xlane.xlu0 %1676
        %v1678 = vrcp.pop %v1677
        %v1679 = vmul.f32 %v1674, %v1678
        %v1680 = vpack.c.bf16 %v1679, %v1679
        %v1681 = vpack.c.bf16 %v1646, %v1646
        %v1683 = vsel %vm941, %v1680, 0
        %v1686 = vsel %vm958, %v1681, 0
        %1688 = vmatpush.bf16.msra.mxu0 0
        %1689 = vmatpush.bf16.msra.mxu0 0
        %1690 = vmatpush.bf16.msra.mxu0 0
        %1691 = vmatpush.bf16.msra.mxu0 0
        %1692 = vmatpush.bf16.msra.mxu0 0
        %1693 = vmatpush.bf16.msra.mxu0 0
        %1694 = vmatpush.bf16.msra.mxu0 0
        %1695 = vmatpush.bf16.msra.mxu0 %v1686
        %1696 = vmatmul.bf16.gmra.mxu0 %v1683
        %v1697 = vpop.f32.mrf.mxu0
        %v1698 = vadd.f32 0.0, %v1697
        %v1699 = vpop.f32.mrf.mxu0
        %1700 = vdwg.mxu0
        %1702 = vrot.lane.b32.xlu0 %v1698, 16
        %v1703 = vpop.permute.xlu0 %1702
        %v1705 = vsel %vm922, %v1538, %v1703
        %v1706 = vpack.c.bf16 %v1705, %v1705
        %s1707 = scalar_lea.vmem %s11, 16
        %v1708 = vld [vmem:[%s1707] sm:$0xf]
        %v1709 = vld [vmem:[%s1707 + $0x4] sm:$0xf]
        %v1710 = vld [vmem:[%s1707 + $0x8] sm:$0xf]
        %v1711 = vld [vmem:[%s1707 + $0xc] sm:$0xf]
        %s1712 = scalar_lea.vmem %s12, 1
        %v1713 = vld [vmem:[%s1712] sm:$0x1]
        %v1715 = vperm.slane %v1713, 0
        %v1721 = vunpack.c.l.b16 %v1708
        %v1722 = vunpack.c.l.b16 %v1709
        %v1723 = vunpack.c.l.b16 %v1710
        %v1724 = vunpack.c.l.b16 %v1711
        %v1725 = vpack.c.b16 %v1722, %v1721
        %v1726 = vpack.c.b16 %v1724, %v1723
        %v1730 = vsel %vm736, %v1706, 0
        %1732 = vmatpush.bf16.msra.mxu0 0
        %1733 = vmatpush.bf16.msra.mxu0 0
        %1734 = vmatpush.bf16.msra.mxu0 0
        %1735 = vmatpush.bf16.msra.mxu0 0
        %1736 = vmatpush.bf16.msra.mxu0 0
        %1737 = vmatpush.bf16.msra.mxu0 0
        %1738 = vmatpush.bf16.msra.mxu0 %v1726
        %1739 = vmatpush.bf16.msra.mxu0 %v1725
        %1740 = vmatmul.bf16.gmra.mxu0 %v1730
        %v1741 = vpop.f32.mrf.mxu0
        %v1742 = vadd.f32 %v1715, %v1741
        %v1743 = vpop.f32.mrf.mxu0
        %1744 = vdwg.mxu0
        %v1745 = vadd.f32 %v1742, %v1342
        %s1746 = scalar_lea.vmem %s13, 1
        %v1747 = vld [vmem:[%s1746] sm:$0x1]
        %s1748 = scalar_lea.vmem %s14, 1
        %v1749 = vld [vmem:[%s1748] sm:$0x1]
        %v1750 = vsel %vm736, %v1745, 0.0
        %1751 = vadd.xlane.f32.xlu0 %v1750
        %v1752 = vpop.xlane.xlu0 %1751
        %v1753 = vmul.f32 %v1752, %v746
        %v1754 = vsub.f32 %v1745, %v1753
        %v1755 = vmul.f32 %v1754, %v1754
        %v1756 = vsel %vm736, %v1755, 0.0
        %1757 = vadd.xlane.f32.xlu0 %v1756
        %v1758 = vpop.xlane.xlu0 %1757
        %v1759 = vmul.f32 %v1758, %v746
        %v1760 = vadd.f32 %v1759, 1e-12
        %v1761 = vrsqrt.pop %v1760
        %v1762 = vmul.f32 %v1761, %v1760
        %v1763 = vmul.f32 %v1762, %v1761
        %v1764 = vmul.f32 0.5, %v1763
        %v1765 = vsub.f32 1.5, %v1764
        %v1766 = vmul.f32 %v1761, %v1765
        %vm1767 = vweird.f32 %v1760
        %vm1768 = vweird.f32 %v1761
        %vm1769 = vmor %vm1767, %vm1768
        %v1770 = vsel %vm1769, %v1761, %v1766
        %v1771 = vmul.f32 %v1754, %v1770
        %v1773 = vperm.slane %v1747, 0
        %v1775 = vmul.f32 %v1771, %v1773
        %v1777 = vperm.slane %v1749, 0
        %v1779 = vadd.f32 %v1775, %v1777
        %v1780 = vpack.c.bf16 %v1779, %v1779
        %s1781 = scalar_lea.vmem %s15, 16
        %v1782 = vld [vmem:[%s1781] sm:$0xf]
        %v1783 = vld [vmem:[%s1781 + $0x4] sm:$0xf]
        %v1784 = vld [vmem:[%s1781 + $0x8] sm:$0xf]
        %v1785 = vld [vmem:[%s1781 + $0xc] sm:$0xf]
        %s1786 = scalar_lea.vmem %s16, 1
        %v1787 = vld [vmem:[%s1786] sm:$0x1]
        %v1789 = vperm.slane %v1787, 0
        %v1795 = vunpack.c.l.b16 %v1782
        %v1796 = vunpack.c.l.b16 %v1783
        %v1797 = vunpack.c.l.b16 %v1784
        %v1798 = vunpack.c.l.b16 %v1785
        %v1799 = vpack.c.b16 %v1796, %v1795
        %v1800 = vpack.c.b16 %v1798, %v1797
        %v1804 = vsel %vm736, %v1780, 0
        %1806 = vmatpush.bf16.msra.mxu0 0
        %1807 = vmatpush.bf16.msra.mxu0 0
        %1808 = vmatpush.bf16.msra.mxu0 0
        %1809 = vmatpush.bf16.msra.mxu0 0
        %1810 = vmatpush.bf16.msra.mxu0 0
        %1811 = vmatpush.bf16.msra.mxu0 0
        %1812 = vmatpush.bf16.msra.mxu0 %v1800
        %1813 = vmatpush.bf16.msra.mxu0 %v1799
        %1814 = vmatmul.bf16.gmra.mxu0 %v1804
        %v1815 = vpop.f32.mrf.mxu0
        %v1816 = vadd.f32 %v1789, %v1815
        %v1817 = vpop.f32.mrf.mxu0
        %1818 = vdwg.mxu0
        %v1819 = vmul.f32 %v1816, 0.5
        %v1820 = vmul.f32 %v1816, 0.044715
        %v1821 = vmul.f32 %v1820, %v1816
        %v1822 = vmul.f32 %v1821, %v1816
        %v1823 = vadd.f32 %v1816, %v1822
        %v1824 = vmul.f32 %v1823, 0.7978846
        %v1825 = vtanh.pop %v1824
        %v1826 = vadd.f32 %v1825, 1.0
        %v1827 = vmul.f32 %v1819, %v1826
        %v1828 = vpack.c.bf16 %v1827, %v1827
        %s1829 = scalar_lea.vmem %s17, 32
        %v1830 = vld [vmem:[%s1829] sm:$0xf]
        %v1831 = vld [vmem:[%s1829 + $0x4] sm:$0xf]
        %v1832 = vld [vmem:[%s1829 + $0x8] sm:$0xf]
        %v1833 = vld [vmem:[%s1829 + $0xc] sm:$0xf]
        %v1834 = vld [vmem:[%s1829 + $0x10] sm:$0xf]
        %v1835 = vld [vmem:[%s1829 + $0x14] sm:$0xf]
        %v1836 = vld [vmem:[%s1829 + $0x18] sm:$0xf]
        %v1837 = vld [vmem:[%s1829 + $0x1c] sm:$0xf]
        %s1838 = scalar_lea.vmem %s18, 1
        %v1839 = vld [vmem:[%s1838] sm:$0x1]
        %v1841 = vperm.slane %v1839, 0
        %v1851 = vunpack.c.l.b16 %v1830
        %v1852 = vunpack.c.l.b16 %v1831
        %v1853 = vunpack.c.l.b16 %v1832
        %v1854 = vunpack.c.l.b16 %v1833
        %v1855 = vunpack.c.l.b16 %v1834
        %v1856 = vunpack.c.l.b16 %v1835
        %v1857 = vunpack.c.l.b16 %v1836
        %v1858 = vunpack.c.l.b16 %v1837
        %v1859 = vpack.c.b16 %v1852, %v1851
        %v1860 = vpack.c.b16 %v1854, %v1853
        %v1861 = vpack.c.b16 %v1856, %v1855
        %v1862 = vpack.c.b16 %v1858, %v1857
        %v1868 = vsel %vm1293, %v1828, 0
        %1870 = vmatpush.bf16.msra.mxu0 0
        %1871 = vmatpush.bf16.msra.mxu0 0
        %1872 = vmatpush.bf16.msra.mxu0 0
        %1873 = vmatpush.bf16.msra.mxu0 0
        %1874 = vmatpush.bf16.msra.mxu0 %v1862
        %1875 = vmatpush.bf16.msra.mxu0 %v1861
        %1876 = vmatpush.bf16.msra.mxu0 %v1860
        %1877 = vmatpush.bf16.msra.mxu0 %v1859
        %1878 = vmatmul.bf16.gmra.mxu0 %v1868
        %v1879 = vpop.f32.mrf.mxu0
        %v1880 = vadd.f32 %v1841, %v1879
        %v1881 = vpop.f32.mrf.mxu0
        %1882 = vdwg.mxu0
        %v1883 = vadd.f32 %v1880, %v1779
        %s1884 = scalar_lea.vmem %s19, 1
        %v1885 = vld [vmem:[%s1884] sm:$0x1]
        %s1886 = scalar_lea.vmem %s20, 1
        %v1887 = vld [vmem:[%s1886] sm:$0x1]
        %v1888 = vsel %vm736, %v1883, 0.0
        %1889 = vadd.xlane.f32.xlu0 %v1888
        %v1890 = vpop.xlane.xlu0 %1889
        %v1891 = vmul.f32 %v1890, %v746
        %v1892 = vsub.f32 %v1883, %v1891
        %v1893 = vmul.f32 %v1892, %v1892
        %v1894 = vsel %vm736, %v1893, 0.0
        %1895 = vadd.xlane.f32.xlu0 %v1894
        %v1896 = vpop.xlane.xlu0 %1895
        %v1897 = vmul.f32 %v1896, %v746
        %v1898 = vadd.f32 %v1897, 1e-12
        %v1899 = vrsqrt.pop %v1898
        %v1900 = vmul.f32 %v1899, %v1898
        %v1901 = vmul.f32 %v1900, %v1899
        %v1902 = vmul.f32 0.5, %v1901
        %v1903 = vsub.f32 1.5, %v1902
        %v1904 = vmul.f32 %v1899, %v1903
        %vm1905 = vweird.f32 %v1898
        %vm1906 = vweird.f32 %v1899
        %vm1907 = vmor %vm1905, %vm1906
        %v1908 = vsel %vm1907, %v1899, %v1904
        %v1909 = vmul.f32 %v1892, %v1908
        %v1911 = vperm.slane %v1885, 0
        %v1913 = vmul.f32 %v1909, %v1911
        %v1915 = vperm.slane %v1887, 0
        %v1917 = vadd.f32 %v1913, %v1915
        %v1918 = vpack.c.bf16 %v1917, %v1917
        %v1919 = vld [vmem:[%s21] sm:$0xf]
        %v1920 = vld [vmem:[%s21 + $0x4] sm:$0xf]
        %v1921 = vld [vmem:[%s21 + $0x8] sm:$0xf]
        %v1922 = vld [vmem:[%s21 + $0xc] sm:$0xf]
        %v1923 = vld [vmem:[%s22] sm:$0x1]
        %v1928 = vunpack.c.l.b16 %v1919
        %v1929 = vunpack.c.l.b16 %v1920
        %v1930 = vunpack.c.l.b16 %v1921
        %v1931 = vunpack.c.l.b16 %v1922
        %v1932 = vpack.c.b16 %v1929, %v1928
        %v1933 = vpack.c.b16 %v1931, %v1930
        %v1937 = vsel %vm736, %v1918, 0
        %1939 = vmatpush.bf16.msra.mxu0 0
        %1940 = vmatpush.bf16.msra.mxu0 0
        %1941 = vmatpush.bf16.msra.mxu0 0
        %1942 = vmatpush.bf16.msra.mxu0 0
        %1943 = vmatpush.bf16.msra.mxu0 0
        %1944 = vmatpush.bf16.msra.mxu0 0
        %1945 = vmatpush.bf16.msra.mxu0 %v1933
        %1946 = vmatpush.bf16.msra.mxu0 %v1932
        %1947 = vmatmul.bf16.gmra.mxu0 %v1937
        %v1948 = vpop.f32.mrf.mxu0
        %v1949 = vadd.f32 %v1923, %v1948
        %v1950 = vpop.f32.mrf.mxu0
        %1951 = vdwg.mxu0
        %v1952 = vlaneseq
        %v1953 = vand.u32 %v1952, 127
        %vm1954 = vcmp.lt.s32.totalorder %v1953, 3
        %v1955 = vsel %vm1954, %v1949, -1e+30
        %vm1956 = vcmask 1040384
        %v1957 = vsel %vm1956, %v1955, -inf
        %1958 = vmax.xlane.f32.xlu0 %v1957
        %v1959 = vpop.xlane.xlu0 %1958
        %v1960 = vsub.f32 %v1955, %v1959
        %v1961 = vmul.f32 %v1960, 1.442695
        %v1962 = vpow.pop %v1961
        %v1963 = vsel %vm1956, %v1962, 0.0
        %1964 = vadd.xlane.f32.xlu0 %v1963
        %v1965 = vpop.xlane.xlu0 %1964
        %v1966 = vlog2.pop %v1965
        %v1967 = vmul.f32 %v1966, 0.6931472
        %v1968 = vadd.f32 %v1967, %v1959
        %s1969 = sld [smem:[#allocation2 + %s35]]
        %v1970 = vstv %s1969
        %vm1971 = vcmp.eq.s32.totalorder %v1953, %v1970
        %v1972 = vsel %vm1971, %v1949, 0.0
        %v1973 = vsel %vm1956, %v1972, 0.0
        %1974 = vadd.xlane.f32.xlu0 %v1973
        %v1975 = vpop.xlane.xlu0 %1974
        %v1976 = vsub.f32 %v1968, %v1975
        %vm1977 = vcmp.eq.s32.totalorder %v1953, 127
        %v1978 = vsel %vm1977, %v1976, %v1949
        %1979 = vst [vmem:[%s731] sm:$0x1] %v1978
        %p1980 = scmp.lt.s32.totalorder %s35, 1
        %s1981 = scalar_select %p1980, %s35, 1
        %s1982 = scalar_lea.vmem %s23, %s1981
        // Predicated region
        $region117: #{_lambda_.1} parent=111 // pred_check
          %p1983 = pneg %p546
        $region118: #{_lambda_.1} parent=111 // pred_check_branch
          %1985 = sbr.rel (%p1983) target = $region120
        $region119: #{_lambda_.1} parent=111 // pred_region
          _
        $region120: #{_lambda_.1} parent=111 // pred_fallthru
          _
      $region112: #{_lambda_.1} parent=5 // pred_fallthru
        _
      %p1986 = scmp.le.s32.totalorder 2, %s30
      // Predicated region
      $region121: #{_lambda_.1} parent=5 // pred_check
        %p1987 = pneg %p1986
      $region122: #{_lambda_.1} parent=5 // pred_check_branch
        %1989 = sbr.rel (%p1987) target = $region124
      $region123: #{_lambda_.1} parent=5 // pred_region
        %s1990 = ssub.s32 %s30, 2
        // Predicated region
        $region125: #{_lambda_.1} parent=123 // pred_check
          %p1991 = pneg %p552
        $region126: #{_lambda_.1} parent=123 // pred_check_branch
          %1993 = sbr.rel (%p1991) target = $region128
        $region127: #{_lambda_.1} parent=123 // pred_region
          %p1994 = scmp.lt.s32.totalorder %s36, 1
          %s1995 = scalar_select %p1994, %s36, 1
          %s1996 = scalar_lea.vmem %s23, %s1995
        $region128: #{_lambda_.1} parent=123 // pred_fallthru
          _
      $region124: #{_lambda_.1} parent=5 // pred_fallthru
        _
    $region6: #{_lambda_.1} parent=1 // loop_footer
      %s34 = sadd.s32 1, %s30
    $region7: #{_lambda_.1} parent=1 // loop_footer_branch
      %29 = sbr.rel target = $region3
    $region8: #{_lambda_.1} parent=1 // loop_exit
      _
    %1997 = vsyncpa [#allocation3], 1
    %s1998 = scalar_lea.sflag [#allocation3], 1
    %1999 = vsyncpa %s1998, 1

</llo_original>
